<compile_context>
chip_gen: v6e
topology: v6e:2x2x1
jax: 0.10.0
libtpu: 0.0.40
codegen_flags: <defaults>
</compile_context>

<pallas_src>
from functools import partial

import jax
import jax.numpy as jnp
from jax.experimental import pallas as pl
from jax.experimental.pallas import tpu as pltpu


def att_lstm_kernel(x_ref, w_ih_ref, w_hh_ref, b_ref, w_att_ref, fc_w_ref,
                    fc_b_ref, o_ref, *, lag, hidden, in_dim):
    B = x_ref.shape[0]
    x = x_ref[...]                               # (B, lag, in_dim), f32
    w_ih = w_ih_ref[...]                         # (in_dim, 4H)
    w_hh = w_hh_ref[...]                         # (H, 4H)
    b = b_ref[...]                               # (1, 4H)
    w_att = w_att_ref[...]                       # (lag, H)

    # ---- Input projection hoisted out of the recurrence (off the serial chain).
    # Broadcast MAC over in_dim keeps this robust for in_dim == 1 (no degenerate
    # matmul contraction).  Result: (B, lag, 4H).
    gates_x = x[:, :, 0:1] * w_ih[0:1, :][None, :, :]
    for d in range(1, in_dim):
        gates_x = gates_x + x[:, :, d:d + 1] * w_ih[d:d + 1, :][None, :, :]

    h = jnp.zeros((B, hidden), jnp.float32)
    c = jnp.zeros((B, hidden), jnp.float32)
    hs = []

    # ---- Recurrent LSTM loop (statically unrolled over lag); only the
    # h @ w_hh + add + nonlinearity chain is loop-carried.
    for t in range(lag):
        gates = (gates_x[:, t, :]
                 + jnp.dot(h, w_hh, preferred_element_type=jnp.float32)
                 + b)                                                # (B, 4H)
        # Two full-lane-width transcendental passes, then static slices.
        sig = jax.nn.sigmoid(gates)
        th = jnp.tanh(gates)
        i_g = sig[:, 0 * hidden:1 * hidden]
        f_g = sig[:, 1 * hidden:2 * hidden]
        g_g = th[:, 2 * hidden:3 * hidden]
        o_g = sig[:, 3 * hidden:4 * hidden]
        c = f_g * c + i_g * g_g
        h = o_g * jnp.tanh(c)
        hs.append(h)                                                 # (B, H)

    # ---- time_att + bmm, entirely on register values (no VMEM scratch).
    # scores_t = sum_h(h_t * W[t]); softmax over t; ctx = sum_t att_t * h_t.
    scores = [jnp.sum(hs[t] * w_att[t:t + 1, :], axis=-1, keepdims=True)
              for t in range(lag)]                                   # lag x (B, 1)
    m = scores[0]
    for t in range(1, lag):
        m = jnp.maximum(m, scores[t])
    exps = [jnp.exp(s_t - m) for s_t in scores]                      # lag x (B, 1)
    denom = exps[0]
    for t in range(1, lag):
        denom = denom + exps[t]
    ctx = exps[0] * hs[0]
    for t in range(1, lag):
        ctx = ctx + exps[t] * hs[t]
    ctx = ctx / denom                                                # (B, H)

    # ---- fc: Linear + ReLU.
    out = jnp.dot(ctx, fc_w_ref[...],
                  preferred_element_type=jnp.float32) + fc_b_ref[...]
    o_ref[...] = jnp.maximum(out, 0.0)


def att_lstm_forward(x, params):
    B, lag, in_dim = x.shape
    hidden = params["w_hh"].shape[0]
    out_dim = params["fc_w"].shape[1]
    kernel = partial(att_lstm_kernel, lag=lag, hidden=hidden, in_dim=in_dim)
    # NOTE: for large batch, add a batch grid axis with a "parallel"
    # dimension_semantics so v7x's two TensorCores split the work; at B=2 a
    # gridless single invocation is both correct and fastest.
    out = pl.pallas_call(
        kernel,
        out_shape=jax.ShapeDtypeStruct((B, out_dim), jnp.float32),
        in_specs=[pl.BlockSpec(memory_space=pltpu.MemorySpace.VMEM)] * 7,
        out_specs=pl.BlockSpec(memory_space=pltpu.MemorySpace.VMEM),
    )(x, params["w_ih"], params["w_hh"], params["b"], params["w_att"],
      params["fc_w"], params["fc_b"])
    return out.reshape(B, 1, out_dim)


def att_lstm_ref(x, p):
    """Pure-JAX reference mirroring the PyTorch forward semantics."""
    B, lag, _ = x.shape
    H = p["w_hh"].shape[0]
    h = jnp.zeros((B, H), jnp.float32)
    c = jnp.zeros((B, H), jnp.float32)
    hs = []
    for t in range(lag):
        gates = x[:, t, :] @ p["w_ih"] + h @ p["w_hh"] + p["b"]
        i = jax.nn.sigmoid(gates[:, :H])
        f = jax.nn.sigmoid(gates[:, H:2 * H])
        g = jnp.tanh(gates[:, 2 * H:3 * H])
        o = jax.nn.sigmoid(gates[:, 3 * H:])
        c = f * c + i * g
        h = o * jnp.tanh(c)
        hs.append(h)
    ht = jnp.stack(hs, axis=1)                       # (B, lag, H)
    scores = jnp.sum(ht * p["w_att"][None], axis=2)  # (B, lag)
    att = jax.nn.softmax(scores, axis=1)
    ctx = jnp.einsum("bl,blh->bh", att, ht)          # (B, H)
    out = jnp.maximum(ctx @ p["fc_w"] + p["fc_b"], 0.0)
    return out.reshape(B, 1, -1)


def make_params(key, lag, in_dim, hidden, out_dim):
    ks = jax.random.split(key, 6)
    scale = 0.1
    return {
        "w_ih": scale * jax.random.normal(ks[0], (in_dim, 4 * hidden), jnp.float32),
        "w_hh": scale * jax.random.normal(ks[1], (hidden, 4 * hidden), jnp.float32),
        "b": scale * jax.random.normal(ks[2], (1, 4 * hidden), jnp.float32),
        "w_att": scale * jax.random.normal(ks[3], (lag, hidden), jnp.float32),
        "fc_w": scale * jax.random.normal(ks[4], (hidden, out_dim), jnp.float32),
        "fc_b": scale * jax.random.normal(ks[5], (1, out_dim), jnp.float32),
    }


if __name__ == "__main__":
    B, lag, in_dim, hidden, out_dim = 2, 8, 1, 32, 32

    key = jax.random.PRNGKey(0)
    k_x, k_p = jax.random.split(key)
    x = jax.random.normal(k_x, (B, lag, in_dim), jnp.float32)
    params = make_params(k_p, lag, in_dim, hidden, out_dim)

    out = att_lstm_forward(x, params)
    out = jax.block_until_ready(out)

    ref = att_lstm_ref(x, params)
    assert out.shape == (B, 1, out_dim)
    assert jnp.allclose(out, ref, atol=1e-4, rtol=1e-4), (
        f"max abs diff {jnp.max(jnp.abs(out - ref))}")

    print("KERNEL_OK")
</pallas_src>

<mosaic_0001>
module attributes {stable_mosaic.version = 11 : i64} {
  func.func @att_lstm_kernel(%arg0: memref<2x8x1xf32, #tpu.memory_space<vmem>>, %arg1: memref<1x128xf32, #tpu.memory_space<vmem>>, %arg2: memref<32x128xf32, #tpu.memory_space<vmem>>, %arg3: memref<1x128xf32, #tpu.memory_space<vmem>>, %arg4: memref<8x32xf32, #tpu.memory_space<vmem>>, %arg5: memref<32x32xf32, #tpu.memory_space<vmem>>, %arg6: memref<1x32xf32, #tpu.memory_space<vmem>>, %arg7: memref<2x32xf32, #tpu.memory_space<vmem>>) attributes {dimension_semantics = [], scalar_prefetch = 0 : i64, scratch_operands = 0 : i64, tpu.core_type = #tpu.core_type<tc>} {
    %c0 = arith.constant 0 : index
    %c0_0 = arith.constant 0 : index
    %c0_1 = arith.constant 0 : index
    %0 = vector.load %arg0[%c0, %c0_0, %c0_1] : memref<2x8x1xf32, #tpu.memory_space<vmem>>, vector<2x8x1xf32>
    %c0_2 = arith.constant 0 : index
    %c0_3 = arith.constant 0 : index
    %1 = vector.load %arg1[%c0_2, %c0_3] : memref<1x128xf32, #tpu.memory_space<vmem>>, vector<1x128xf32>
    %c0_4 = arith.constant 0 : index
    %c0_5 = arith.constant 0 : index
    %2 = vector.load %arg2[%c0_4, %c0_5] : memref<32x128xf32, #tpu.memory_space<vmem>>, vector<32x128xf32>
    %c0_6 = arith.constant 0 : index
    %c0_7 = arith.constant 0 : index
    %3 = vector.load %arg3[%c0_6, %c0_7] : memref<1x128xf32, #tpu.memory_space<vmem>>, vector<1x128xf32>
    %c0_8 = arith.constant 0 : index
    %c0_9 = arith.constant 0 : index
    %4 = vector.load %arg4[%c0_8, %c0_9] : memref<8x32xf32, #tpu.memory_space<vmem>>, vector<8x32xf32>
    %5 = vector.shape_cast %1 : vector<1x128xf32> to vector<1x1x128xf32>
    %6 = vector.broadcast %0 : vector<2x8x1xf32> to vector<2x8x128xf32>
    %7 = vector.broadcast %5 : vector<1x1x128xf32> to vector<2x8x128xf32>
    %8 = arith.mulf %6, %7 : vector<2x8x128xf32>
    %cst = arith.constant 0.000000e+00 : f32
    %9 = vector.broadcast %cst : f32 to vector<2x32xf32>
    %cst_10 = arith.constant 0.000000e+00 : f32
    %10 = vector.broadcast %cst_10 : f32 to vector<2x32xf32>
    %11 = vector.extract_strided_slice %8 {offsets = [0, 0, 0], sizes = [2, 1, 128], strides = [1, 1, 1]} : vector<2x8x128xf32> to vector<2x1x128xf32>
    %12 = vector.shape_cast %11 : vector<2x1x128xf32> to vector<2x128xf32>
    %cst_11 = arith.constant dense<0.000000e+00> : vector<2x128xf32>
    %13 = tpu.matmul %9, %2, %cst_11 {dimension_numbers = #tpu.dot_dimension_numbers<[1], [0], [0], [1], [0, 0, 1, 1], [], []>} : vector<2x32xf32>, vector<32x128xf32>, vector<2x128xf32> -> vector<2x128xf32>
    %14 = arith.addf %12, %13 : vector<2x128xf32>
    %15 = vector.broadcast %3 : vector<1x128xf32> to vector<2x128xf32>
    %16 = arith.addf %14, %15 : vector<2x128xf32>
    %17 = arith.negf %16 : vector<2x128xf32>
    %18 = math.exp %17 : vector<2x128xf32>
    %cst_12 = arith.constant 1.000000e+00 : f32
    %19 = vector.broadcast %cst_12 : f32 to vector<2x128xf32>
    %20 = arith.addf %19, %18 : vector<2x128xf32>
    %21 = arith.divf %19, %20 : vector<2x128xf32>
    %22 = math.tanh %16 : vector<2x128xf32>
    %23 = vector.extract_strided_slice %21 {offsets = [0, 0], sizes = [2, 32], strides = [1, 1]} : vector<2x128xf32> to vector<2x32xf32>
    %24 = vector.extract_strided_slice %21 {offsets = [0, 32], sizes = [2, 32], strides = [1, 1]} : vector<2x128xf32> to vector<2x32xf32>
    %25 = vector.extract_strided_slice %22 {offsets = [0, 64], sizes = [2, 32], strides = [1, 1]} : vector<2x128xf32> to vector<2x32xf32>
    %26 = vector.extract_strided_slice %21 {offsets = [0, 96], sizes = [2, 32], strides = [1, 1]} : vector<2x128xf32> to vector<2x32xf32>
    %27 = arith.mulf %24, %10 : vector<2x32xf32>
    %28 = arith.mulf %23, %25 : vector<2x32xf32>
    %29 = arith.addf %27, %28 : vector<2x32xf32>
    %30 = math.tanh %29 : vector<2x32xf32>
    %31 = arith.mulf %26, %30 : vector<2x32xf32>
    %32 = vector.extract_strided_slice %8 {offsets = [0, 1, 0], sizes = [2, 1, 128], strides = [1, 1, 1]} : vector<2x8x128xf32> to vector<2x1x128xf32>
    %33 = vector.shape_cast %32 : vector<2x1x128xf32> to vector<2x128xf32>
    %cst_13 = arith.constant dense<0.000000e+00> : vector<2x128xf32>
    %34 = tpu.matmul %31, %2, %cst_13 {dimension_numbers = #tpu.dot_dimension_numbers<[1], [0], [0], [1], [0, 0, 1, 1], [], []>} : vector<2x32xf32>, vector<32x128xf32>, vector<2x128xf32> -> vector<2x128xf32>
    %35 = arith.addf %33, %34 : vector<2x128xf32>
    %36 = vector.broadcast %3 : vector<1x128xf32> to vector<2x128xf32>
    %37 = arith.addf %35, %36 : vector<2x128xf32>
    %38 = arith.negf %37 : vector<2x128xf32>
    %39 = math.exp %38 : vector<2x128xf32>
    %cst_14 = arith.constant 1.000000e+00 : f32
    %40 = vector.broadcast %cst_14 : f32 to vector<2x128xf32>
    %41 = arith.addf %40, %39 : vector<2x128xf32>
    %42 = arith.divf %40, %41 : vector<2x128xf32>
    %43 = math.tanh %37 : vector<2x128xf32>
    %44 = vector.extract_strided_slice %42 {offsets = [0, 0], sizes = [2, 32], strides = [1, 1]} : vector<2x128xf32> to vector<2x32xf32>
    %45 = vector.extract_strided_slice %42 {offsets = [0, 32], sizes = [2, 32], strides = [1, 1]} : vector<2x128xf32> to vector<2x32xf32>
    %46 = vector.extract_strided_slice %43 {offsets = [0, 64], sizes = [2, 32], strides = [1, 1]} : vector<2x128xf32> to vector<2x32xf32>
    %47 = vector.extract_strided_slice %42 {offsets = [0, 96], sizes = [2, 32], strides = [1, 1]} : vector<2x128xf32> to vector<2x32xf32>
    %48 = arith.mulf %45, %29 : vector<2x32xf32>
    %49 = arith.mulf %44, %46 : vector<2x32xf32>
    %50 = arith.addf %48, %49 : vector<2x32xf32>
    %51 = math.tanh %50 : vector<2x32xf32>
    %52 = arith.mulf %47, %51 : vector<2x32xf32>
    %53 = vector.extract_strided_slice %8 {offsets = [0, 2, 0], sizes = [2, 1, 128], strides = [1, 1, 1]} : vector<2x8x128xf32> to vector<2x1x128xf32>
    %54 = vector.shape_cast %53 : vector<2x1x128xf32> to vector<2x128xf32>
    %cst_15 = arith.constant dense<0.000000e+00> : vector<2x128xf32>
    %55 = tpu.matmul %52, %2, %cst_15 {dimension_numbers = #tpu.dot_dimension_numbers<[1], [0], [0], [1], [0, 0, 1, 1], [], []>} : vector<2x32xf32>, vector<32x128xf32>, vector<2x128xf32> -> vector<2x128xf32>
    %56 = arith.addf %54, %55 : vector<2x128xf32>
    %57 = vector.broadcast %3 : vector<1x128xf32> to vector<2x128xf32>
    %58 = arith.addf %56, %57 : vector<2x128xf32>
    %59 = arith.negf %58 : vector<2x128xf32>
    %60 = math.exp %59 : vector<2x128xf32>
    %cst_16 = arith.constant 1.000000e+00 : f32
    %61 = vector.broadcast %cst_16 : f32 to vector<2x128xf32>
    %62 = arith.addf %61, %60 : vector<2x128xf32>
    %63 = arith.divf %61, %62 : vector<2x128xf32>
    %64 = math.tanh %58 : vector<2x128xf32>
    %65 = vector.extract_strided_slice %63 {offsets = [0, 0], sizes = [2, 32], strides = [1, 1]} : vector<2x128xf32> to vector<2x32xf32>
    %66 = vector.extract_strided_slice %63 {offsets = [0, 32], sizes = [2, 32], strides = [1, 1]} : vector<2x128xf32> to vector<2x32xf32>
    %67 = vector.extract_strided_slice %64 {offsets = [0, 64], sizes = [2, 32], strides = [1, 1]} : vector<2x128xf32> to vector<2x32xf32>
    %68 = vector.extract_strided_slice %63 {offsets = [0, 96], sizes = [2, 32], strides = [1, 1]} : vector<2x128xf32> to vector<2x32xf32>
    %69 = arith.mulf %66, %50 : vector<2x32xf32>
    %70 = arith.mulf %65, %67 : vector<2x32xf32>
    %71 = arith.addf %69, %70 : vector<2x32xf32>
    %72 = math.tanh %71 : vector<2x32xf32>
    %73 = arith.mulf %68, %72 : vector<2x32xf32>
    %74 = vector.extract_strided_slice %8 {offsets = [0, 3, 0], sizes = [2, 1, 128], strides = [1, 1, 1]} : vector<2x8x128xf32> to vector<2x1x128xf32>
    %75 = vector.shape_cast %74 : vector<2x1x128xf32> to vector<2x128xf32>
    %cst_17 = arith.constant dense<0.000000e+00> : vector<2x128xf32>
    %76 = tpu.matmul %73, %2, %cst_17 {dimension_numbers = #tpu.dot_dimension_numbers<[1], [0], [0], [1], [0, 0, 1, 1], [], []>} : vector<2x32xf32>, vector<32x128xf32>, vector<2x128xf32> -> vector<2x128xf32>
    %77 = arith.addf %75, %76 : vector<2x128xf32>
    %78 = vector.broadcast %3 : vector<1x128xf32> to vector<2x128xf32>
    %79 = arith.addf %77, %78 : vector<2x128xf32>
    %80 = arith.negf %79 : vector<2x128xf32>
    %81 = math.exp %80 : vector<2x128xf32>
    %cst_18 = arith.constant 1.000000e+00 : f32
    %82 = vector.broadcast %cst_18 : f32 to vector<2x128xf32>
    %83 = arith.addf %82, %81 : vector<2x128xf32>
    %84 = arith.divf %82, %83 : vector<2x128xf32>
    %85 = math.tanh %79 : vector<2x128xf32>
    %86 = vector.extract_strided_slice %84 {offsets = [0, 0], sizes = [2, 32], strides = [1, 1]} : vector<2x128xf32> to vector<2x32xf32>
    %87 = vector.extract_strided_slice %84 {offsets = [0, 32], sizes = [2, 32], strides = [1, 1]} : vector<2x128xf32> to vector<2x32xf32>
    %88 = vector.extract_strided_slice %85 {offsets = [0, 64], sizes = [2, 32], strides = [1, 1]} : vector<2x128xf32> to vector<2x32xf32>
    %89 = vector.extract_strided_slice %84 {offsets = [0, 96], sizes = [2, 32], strides = [1, 1]} : vector<2x128xf32> to vector<2x32xf32>
    %90 = arith.mulf %87, %71 : vector<2x32xf32>
    %91 = arith.mulf %86, %88 : vector<2x32xf32>
    %92 = arith.addf %90, %91 : vector<2x32xf32>
    %93 = math.tanh %92 : vector<2x32xf32>
    %94 = arith.mulf %89, %93 : vector<2x32xf32>
    %95 = vector.extract_strided_slice %8 {offsets = [0, 4, 0], sizes = [2, 1, 128], strides = [1, 1, 1]} : vector<2x8x128xf32> to vector<2x1x128xf32>
    %96 = vector.shape_cast %95 : vector<2x1x128xf32> to vector<2x128xf32>
    %cst_19 = arith.constant dense<0.000000e+00> : vector<2x128xf32>
    %97 = tpu.matmul %94, %2, %cst_19 {dimension_numbers = #tpu.dot_dimension_numbers<[1], [0], [0], [1], [0, 0, 1, 1], [], []>} : vector<2x32xf32>, vector<32x128xf32>, vector<2x128xf32> -> vector<2x128xf32>
    %98 = arith.addf %96, %97 : vector<2x128xf32>
    %99 = vector.broadcast %3 : vector<1x128xf32> to vector<2x128xf32>
    %100 = arith.addf %98, %99 : vector<2x128xf32>
    %101 = arith.negf %100 : vector<2x128xf32>
    %102 = math.exp %101 : vector<2x128xf32>
    %cst_20 = arith.constant 1.000000e+00 : f32
    %103 = vector.broadcast %cst_20 : f32 to vector<2x128xf32>
    %104 = arith.addf %103, %102 : vector<2x128xf32>
    %105 = arith.divf %103, %104 : vector<2x128xf32>
    %106 = math.tanh %100 : vector<2x128xf32>
    %107 = vector.extract_strided_slice %105 {offsets = [0, 0], sizes = [2, 32], strides = [1, 1]} : vector<2x128xf32> to vector<2x32xf32>
    %108 = vector.extract_strided_slice %105 {offsets = [0, 32], sizes = [2, 32], strides = [1, 1]} : vector<2x128xf32> to vector<2x32xf32>
    %109 = vector.extract_strided_slice %106 {offsets = [0, 64], sizes = [2, 32], strides = [1, 1]} : vector<2x128xf32> to vector<2x32xf32>
    %110 = vector.extract_strided_slice %105 {offsets = [0, 96], sizes = [2, 32], strides = [1, 1]} : vector<2x128xf32> to vector<2x32xf32>
    %111 = arith.mulf %108, %92 : vector<2x32xf32>
    %112 = arith.mulf %107, %109 : vector<2x32xf32>
    %113 = arith.addf %111, %112 : vector<2x32xf32>
    %114 = math.tanh %113 : vector<2x32xf32>
    %115 = arith.mulf %110, %114 : vector<2x32xf32>
    %116 = vector.extract_strided_slice %8 {offsets = [0, 5, 0], sizes = [2, 1, 128], strides = [1, 1, 1]} : vector<2x8x128xf32> to vector<2x1x128xf32>
    %117 = vector.shape_cast %116 : vector<2x1x128xf32> to vector<2x128xf32>
    %cst_21 = arith.constant dense<0.000000e+00> : vector<2x128xf32>
    %118 = tpu.matmul %115, %2, %cst_21 {dimension_numbers = #tpu.dot_dimension_numbers<[1], [0], [0], [1], [0, 0, 1, 1], [], []>} : vector<2x32xf32>, vector<32x128xf32>, vector<2x128xf32> -> vector<2x128xf32>
    %119 = arith.addf %117, %118 : vector<2x128xf32>
    %120 = vector.broadcast %3 : vector<1x128xf32> to vector<2x128xf32>
    %121 = arith.addf %119, %120 : vector<2x128xf32>
    %122 = arith.negf %121 : vector<2x128xf32>
    %123 = math.exp %122 : vector<2x128xf32>
    %cst_22 = arith.constant 1.000000e+00 : f32
    %124 = vector.broadcast %cst_22 : f32 to vector<2x128xf32>
    %125 = arith.addf %124, %123 : vector<2x128xf32>
    %126 = arith.divf %124, %125 : vector<2x128xf32>
    %127 = math.tanh %121 : vector<2x128xf32>
    %128 = vector.extract_strided_slice %126 {offsets = [0, 0], sizes = [2, 32], strides = [1, 1]} : vector<2x128xf32> to vector<2x32xf32>
    %129 = vector.extract_strided_slice %126 {offsets = [0, 32], sizes = [2, 32], strides = [1, 1]} : vector<2x128xf32> to vector<2x32xf32>
    %130 = vector.extract_strided_slice %127 {offsets = [0, 64], sizes = [2, 32], strides = [1, 1]} : vector<2x128xf32> to vector<2x32xf32>
    %131 = vector.extract_strided_slice %126 {offsets = [0, 96], sizes = [2, 32], strides = [1, 1]} : vector<2x128xf32> to vector<2x32xf32>
    %132 = arith.mulf %129, %113 : vector<2x32xf32>
    %133 = arith.mulf %128, %130 : vector<2x32xf32>
    %134 = arith.addf %132, %133 : vector<2x32xf32>
    %135 = math.tanh %134 : vector<2x32xf32>
    %136 = arith.mulf %131, %135 : vector<2x32xf32>
    %137 = vector.extract_strided_slice %8 {offsets = [0, 6, 0], sizes = [2, 1, 128], strides = [1, 1, 1]} : vector<2x8x128xf32> to vector<2x1x128xf32>
    %138 = vector.shape_cast %137 : vector<2x1x128xf32> to vector<2x128xf32>
    %cst_23 = arith.constant dense<0.000000e+00> : vector<2x128xf32>
    %139 = tpu.matmul %136, %2, %cst_23 {dimension_numbers = #tpu.dot_dimension_numbers<[1], [0], [0], [1], [0, 0, 1, 1], [], []>} : vector<2x32xf32>, vector<32x128xf32>, vector<2x128xf32> -> vector<2x128xf32>
    %140 = arith.addf %138, %139 : vector<2x128xf32>
    %141 = vector.broadcast %3 : vector<1x128xf32> to vector<2x128xf32>
    %142 = arith.addf %140, %141 : vector<2x128xf32>
    %143 = arith.negf %142 : vector<2x128xf32>
    %144 = math.exp %143 : vector<2x128xf32>
    %cst_24 = arith.constant 1.000000e+00 : f32
    %145 = vector.broadcast %cst_24 : f32 to vector<2x128xf32>
    %146 = arith.addf %145, %144 : vector<2x128xf32>
    %147 = arith.divf %145, %146 : vector<2x128xf32>
    %148 = math.tanh %142 : vector<2x128xf32>
    %149 = vector.extract_strided_slice %147 {offsets = [0, 0], sizes = [2, 32], strides = [1, 1]} : vector<2x128xf32> to vector<2x32xf32>
    %150 = vector.extract_strided_slice %147 {offsets = [0, 32], sizes = [2, 32], strides = [1, 1]} : vector<2x128xf32> to vector<2x32xf32>
    %151 = vector.extract_strided_slice %148 {offsets = [0, 64], sizes = [2, 32], strides = [1, 1]} : vector<2x128xf32> to vector<2x32xf32>
    %152 = vector.extract_strided_slice %147 {offsets = [0, 96], sizes = [2, 32], strides = [1, 1]} : vector<2x128xf32> to vector<2x32xf32>
    %153 = arith.mulf %150, %134 : vector<2x32xf32>
    %154 = arith.mulf %149, %151 : vector<2x32xf32>
    %155 = arith.addf %153, %154 : vector<2x32xf32>
    %156 = math.tanh %155 : vector<2x32xf32>
    %157 = arith.mulf %152, %156 : vector<2x32xf32>
    %158 = vector.extract_strided_slice %8 {offsets = [0, 7, 0], sizes = [2, 1, 128], strides = [1, 1, 1]} : vector<2x8x128xf32> to vector<2x1x128xf32>
    %159 = vector.shape_cast %158 : vector<2x1x128xf32> to vector<2x128xf32>
    %cst_25 = arith.constant dense<0.000000e+00> : vector<2x128xf32>
    %160 = tpu.matmul %157, %2, %cst_25 {dimension_numbers = #tpu.dot_dimension_numbers<[1], [0], [0], [1], [0, 0, 1, 1], [], []>} : vector<2x32xf32>, vector<32x128xf32>, vector<2x128xf32> -> vector<2x128xf32>
    %161 = arith.addf %159, %160 : vector<2x128xf32>
    %162 = vector.broadcast %3 : vector<1x128xf32> to vector<2x128xf32>
    %163 = arith.addf %161, %162 : vector<2x128xf32>
    %164 = arith.negf %163 : vector<2x128xf32>
    %165 = math.exp %164 : vector<2x128xf32>
    %cst_26 = arith.constant 1.000000e+00 : f32
    %166 = vector.broadcast %cst_26 : f32 to vector<2x128xf32>
    %167 = arith.addf %166, %165 : vector<2x128xf32>
    %168 = arith.divf %166, %167 : vector<2x128xf32>
    %169 = math.tanh %163 : vector<2x128xf32>
    %170 = vector.extract_strided_slice %168 {offsets = [0, 0], sizes = [2, 32], strides = [1, 1]} : vector<2x128xf32> to vector<2x32xf32>
    %171 = vector.extract_strided_slice %168 {offsets = [0, 32], sizes = [2, 32], strides = [1, 1]} : vector<2x128xf32> to vector<2x32xf32>
    %172 = vector.extract_strided_slice %169 {offsets = [0, 64], sizes = [2, 32], strides = [1, 1]} : vector<2x128xf32> to vector<2x32xf32>
    %173 = vector.extract_strided_slice %168 {offsets = [0, 96], sizes = [2, 32], strides = [1, 1]} : vector<2x128xf32> to vector<2x32xf32>
    %174 = arith.mulf %171, %155 : vector<2x32xf32>
    %175 = arith.mulf %170, %172 : vector<2x32xf32>
    %176 = arith.addf %174, %175 : vector<2x32xf32>
    %177 = math.tanh %176 : vector<2x32xf32>
    %178 = arith.mulf %173, %177 : vector<2x32xf32>
    %179 = vector.extract_strided_slice %4 {offsets = [0, 0], sizes = [1, 32], strides = [1, 1]} : vector<8x32xf32> to vector<1x32xf32>
    %180 = vector.broadcast %179 : vector<1x32xf32> to vector<2x32xf32>
    %181 = arith.mulf %31, %180 : vector<2x32xf32>
    %cst_27 = arith.constant dense<0.000000e+00> : vector<2xf32>
    %182 = vector.multi_reduction <add>, %181, %cst_27 [1] : vector<2x32xf32> to vector<2xf32>
    %183 = vector.shape_cast %182 : vector<2xf32> to vector<2x1xf32>
    %184 = vector.extract_strided_slice %4 {offsets = [1, 0], sizes = [1, 32], strides = [1, 1]} : vector<8x32xf32> to vector<1x32xf32>
    %185 = vector.broadcast %184 : vector<1x32xf32> to vector<2x32xf32>
    %186 = arith.mulf %52, %185 : vector<2x32xf32>
    %cst_28 = arith.constant dense<0.000000e+00> : vector<2xf32>
    %187 = vector.multi_reduction <add>, %186, %cst_28 [1] : vector<2x32xf32> to vector<2xf32>
    %188 = vector.shape_cast %187 : vector<2xf32> to vector<2x1xf32>
    %189 = vector.extract_strided_slice %4 {offsets = [2, 0], sizes = [1, 32], strides = [1, 1]} : vector<8x32xf32> to vector<1x32xf32>
    %190 = vector.broadcast %189 : vector<1x32xf32> to vector<2x32xf32>
    %191 = arith.mulf %73, %190 : vector<2x32xf32>
    %cst_29 = arith.constant dense<0.000000e+00> : vector<2xf32>
    %192 = vector.multi_reduction <add>, %191, %cst_29 [1] : vector<2x32xf32> to vector<2xf32>
    %193 = vector.shape_cast %192 : vector<2xf32> to vector<2x1xf32>
    %194 = vector.extract_strided_slice %4 {offsets = [3, 0], sizes = [1, 32], strides = [1, 1]} : vector<8x32xf32> to vector<1x32xf32>
    %195 = vector.broadcast %194 : vector<1x32xf32> to vector<2x32xf32>
    %196 = arith.mulf %94, %195 : vector<2x32xf32>
    %cst_30 = arith.constant dense<0.000000e+00> : vector<2xf32>
    %197 = vector.multi_reduction <add>, %196, %cst_30 [1] : vector<2x32xf32> to vector<2xf32>
    %198 = vector.shape_cast %197 : vector<2xf32> to vector<2x1xf32>
    %199 = vector.extract_strided_slice %4 {offsets = [4, 0], sizes = [1, 32], strides = [1, 1]} : vector<8x32xf32> to vector<1x32xf32>
    %200 = vector.broadcast %199 : vector<1x32xf32> to vector<2x32xf32>
    %201 = arith.mulf %115, %200 : vector<2x32xf32>
    %cst_31 = arith.constant dense<0.000000e+00> : vector<2xf32>
    %202 = vector.multi_reduction <add>, %201, %cst_31 [1] : vector<2x32xf32> to vector<2xf32>
    %203 = vector.shape_cast %202 : vector<2xf32> to vector<2x1xf32>
    %204 = vector.extract_strided_slice %4 {offsets = [5, 0], sizes = [1, 32], strides = [1, 1]} : vector<8x32xf32> to vector<1x32xf32>
    %205 = vector.broadcast %204 : vector<1x32xf32> to vector<2x32xf32>
    %206 = arith.mulf %136, %205 : vector<2x32xf32>
    %cst_32 = arith.constant dense<0.000000e+00> : vector<2xf32>
    %207 = vector.multi_reduction <add>, %206, %cst_32 [1] : vector<2x32xf32> to vector<2xf32>
    %208 = vector.shape_cast %207 : vector<2xf32> to vector<2x1xf32>
    %209 = vector.extract_strided_slice %4 {offsets = [6, 0], sizes = [1, 32], strides = [1, 1]} : vector<8x32xf32> to vector<1x32xf32>
    %210 = vector.broadcast %209 : vector<1x32xf32> to vector<2x32xf32>
    %211 = arith.mulf %157, %210 : vector<2x32xf32>
    %cst_33 = arith.constant dense<0.000000e+00> : vector<2xf32>
    %212 = vector.multi_reduction <add>, %211, %cst_33 [1] : vector<2x32xf32> to vector<2xf32>
    %213 = vector.shape_cast %212 : vector<2xf32> to vector<2x1xf32>
    %214 = vector.extract_strided_slice %4 {offsets = [7, 0], sizes = [1, 32], strides = [1, 1]} : vector<8x32xf32> to vector<1x32xf32>
    %215 = vector.broadcast %214 : vector<1x32xf32> to vector<2x32xf32>
    %216 = arith.mulf %178, %215 : vector<2x32xf32>
    %cst_34 = arith.constant dense<0.000000e+00> : vector<2xf32>
    %217 = vector.multi_reduction <add>, %216, %cst_34 [1] : vector<2x32xf32> to vector<2xf32>
    %218 = vector.shape_cast %217 : vector<2xf32> to vector<2x1xf32>
    %219 = arith.maximumf %183, %188 : vector<2x1xf32>
    %220 = arith.maximumf %219, %193 : vector<2x1xf32>
    %221 = arith.maximumf %220, %198 : vector<2x1xf32>
    %222 = arith.maximumf %221, %203 : vector<2x1xf32>
    %223 = arith.maximumf %222, %208 : vector<2x1xf32>
    %224 = arith.maximumf %223, %213 : vector<2x1xf32>
    %225 = arith.maximumf %224, %218 : vector<2x1xf32>
    %226 = arith.subf %183, %225 : vector<2x1xf32>
    %227 = math.exp %226 : vector<2x1xf32>
    %228 = arith.subf %188, %225 : vector<2x1xf32>
    %229 = math.exp %228 : vector<2x1xf32>
    %230 = arith.subf %193, %225 : vector<2x1xf32>
    %231 = math.exp %230 : vector<2x1xf32>
    %232 = arith.subf %198, %225 : vector<2x1xf32>
    %233 = math.exp %232 : vector<2x1xf32>
    %234 = arith.subf %203, %225 : vector<2x1xf32>
    %235 = math.exp %234 : vector<2x1xf32>
    %236 = arith.subf %208, %225 : vector<2x1xf32>
    %237 = math.exp %236 : vector<2x1xf32>
    %238 = arith.subf %213, %225 : vector<2x1xf32>
    %239 = math.exp %238 : vector<2x1xf32>
    %240 = arith.subf %218, %225 : vector<2x1xf32>
    %241 = math.exp %240 : vector<2x1xf32>
    %242 = arith.addf %227, %229 : vector<2x1xf32>
    %243 = arith.addf %242, %231 : vector<2x1xf32>
    %244 = arith.addf %243, %233 : vector<2x1xf32>
    %245 = arith.addf %244, %235 : vector<2x1xf32>
    %246 = arith.addf %245, %237 : vector<2x1xf32>
    %247 = arith.addf %246, %239 : vector<2x1xf32>
    %248 = arith.addf %247, %241 : vector<2x1xf32>
    %249 = vector.broadcast %227 : vector<2x1xf32> to vector<2x32xf32>
    %250 = arith.mulf %249, %31 : vector<2x32xf32>
    %251 = vector.broadcast %229 : vector<2x1xf32> to vector<2x32xf32>
    %252 = arith.mulf %251, %52 : vector<2x32xf32>
    %253 = arith.addf %250, %252 : vector<2x32xf32>
    %254 = vector.broadcast %231 : vector<2x1xf32> to vector<2x32xf32>
    %255 = arith.mulf %254, %73 : vector<2x32xf32>
    %256 = arith.addf %253, %255 : vector<2x32xf32>
    %257 = vector.broadcast %233 : vector<2x1xf32> to vector<2x32xf32>
    %258 = arith.mulf %257, %94 : vector<2x32xf32>
    %259 = arith.addf %256, %258 : vector<2x32xf32>
    %260 = vector.broadcast %235 : vector<2x1xf32> to vector<2x32xf32>
    %261 = arith.mulf %260, %115 : vector<2x32xf32>
    %262 = arith.addf %259, %261 : vector<2x32xf32>
    %263 = vector.broadcast %237 : vector<2x1xf32> to vector<2x32xf32>
    %264 = arith.mulf %263, %136 : vector<2x32xf32>
    %265 = arith.addf %262, %264 : vector<2x32xf32>
    %266 = vector.broadcast %239 : vector<2x1xf32> to vector<2x32xf32>
    %267 = arith.mulf %266, %157 : vector<2x32xf32>
    %268 = arith.addf %265, %267 : vector<2x32xf32>
    %269 = vector.broadcast %241 : vector<2x1xf32> to vector<2x32xf32>
    %270 = arith.mulf %269, %178 : vector<2x32xf32>
    %271 = arith.addf %268, %270 : vector<2x32xf32>
    %272 = vector.broadcast %248 : vector<2x1xf32> to vector<2x32xf32>
    %273 = arith.divf %271, %272 : vector<2x32xf32>
    %c0_35 = arith.constant 0 : index
    %c0_36 = arith.constant 0 : index
    %274 = vector.load %arg5[%c0_35, %c0_36] : memref<32x32xf32, #tpu.memory_space<vmem>>, vector<32x32xf32>
    %cst_37 = arith.constant dense<0.000000e+00> : vector<2x32xf32>
    %275 = tpu.matmul %273, %274, %cst_37 {dimension_numbers = #tpu.dot_dimension_numbers<[1], [0], [0], [1], [0, 0, 1, 1], [], []>} : vector<2x32xf32>, vector<32x32xf32>, vector<2x32xf32> -> vector<2x32xf32>
    %c0_38 = arith.constant 0 : index
    %c0_39 = arith.constant 0 : index
    %276 = vector.load %arg6[%c0_38, %c0_39] : memref<1x32xf32, #tpu.memory_space<vmem>>, vector<1x32xf32>
    %277 = vector.broadcast %276 : vector<1x32xf32> to vector<2x32xf32>
    %278 = arith.addf %275, %277 : vector<2x32xf32>
    %cst_40 = arith.constant 0.000000e+00 : f32
    %279 = vector.broadcast %cst_40 : f32 to vector<2x32xf32>
    %280 = arith.maximumf %278, %279 : vector<2x32xf32>
    %c0_41 = arith.constant 0 : index
    %c0_42 = arith.constant 0 : index
    %281 = vector.load %arg7[%c0_41, %c0_42] : memref<2x32xf32, #tpu.memory_space<vmem>>, vector<2x32xf32>
    tpu.vector_store %arg7[%c0_41, %c0_42], %280 {strides = array<i32>} : memref<2x32xf32, #tpu.memory_space<vmem>>, vector<2x32xf32>,
    return
  }
}

</mosaic_0001>

<llo_original>
// kernel: tpu_custom_call.1
$region0: #{tpu_custom_call.1}
  #allocation0 [shape = 'u32[]', space=smem, size = 0x4, offset = 0x4, fixed_abs, tag = 'smem constant byte address 0x4 - core index']
  #allocation1 [shape = 'u32[144,128]{1,0:T(1,128)}', space=vmem, size = 0x12000, scoped, tag = 'internal scratch']
  %s0 = inlined_call_operand.vmem [shape: f32[2,8,1], index: 0, kind: input, shape index: {}]
  %s1 = inlined_call_operand.vmem [shape: f32[1,128], index: 1, kind: input, shape index: {}]
  %s2 = inlined_call_operand.hbm [shape: f32[32,128], index: 2, kind: input, shape index: {}]
  %s3 = inlined_call_operand.vmem [shape: f32[1,128], index: 3, kind: input, shape index: {}]
  %s4 = inlined_call_operand.vmem [shape: f32[8,32], index: 4, kind: input, shape index: {}]
  %s5 = inlined_call_operand.hbm [shape: f32[32,32], index: 5, kind: input, shape index: {}]
  %s6 = inlined_call_operand.vmem [shape: f32[1,32], index: 6, kind: input, shape index: {}]
  %s7 = inlined_call_operand.hbm [shape: f32[2,32], index: 7, kind: output, shape index: {}]
  %s8 = sld [smem:[#allocation0]]
  $region46: #{tpu_custom_call.1} parent=0
    _
  %s10 = ssub.s32 1, %s8
  %s11 = scalar_select 0, %s10, %s8
  $region1: #{tpu_custom_call.1} parent=0
    #allocation2 [shape = 'u8[16384]{0}', space=vmem, size = 0x4000, scoped, tag = 'input window, operand 2, single buffered']
    #allocation3 [shape = 's32[1]{0}', space=sflag, size = 0x4, scoped, tag = 'scoped memory for tpu_custom_call.1']
    #allocation4 [shape = 's32[1]{0}', space=sflag, size = 0x4, scoped, tag = 'scoped memory for tpu_custom_call.1']
    #allocation5 [shape = 'u8[16384]{0}', space=vmem, size = 0x4000, scoped, tag = 'input window, operand 5, single buffered']
    #allocation6 [shape = 's32[1]{0}', space=sflag, size = 0x4, scoped, tag = 'scoped memory for tpu_custom_call.1']
    #allocation7 [shape = 'u8[1024]{0}', space=vmem, size = 0x400, scoped, tag = 'output window, operand 0, single buffered']
    %12 = vsyncpa [#allocation3], 0
    %13 = vsyncpa [#allocation6], 0
    %14 = vsyncpa [#allocation4], 0
    // Predicated region
    $region2: #{tpu_custom_call.1} parent=1 // pred_check
      _
    $region3: #{tpu_custom_call.1} parent=1 // pred_check_branch
      %16 = sbr.rel (0) target = $region5
    $region4: #{tpu_custom_call.1} parent=1 // pred_region
      _
    $region5: #{tpu_custom_call.1} parent=1 // pred_fallthru
      _
    // Predicated region
    $region6: #{tpu_custom_call.1} parent=1 // pred_check
      _
    $region7: #{tpu_custom_call.1} parent=1 // pred_check_branch
      %18 = sbr.rel (0) target = $region9
    $region8: #{tpu_custom_call.1} parent=1 // pred_region
      _
    $region9: #{tpu_custom_call.1} parent=1 // pred_fallthru
      _
    // Predicated region
    $region10: #{tpu_custom_call.1} parent=1 // pred_check
      _
    $region11: #{tpu_custom_call.1} parent=1 // pred_check_branch
      %20 = sbr.rel (0) target = $region13
    $region12: #{tpu_custom_call.1} parent=1 // pred_region
      %s22 = ssub.s32 512, 512
      %23 = vsyncadd [#allocation3], %s22
      %s24 = sshll.u32 [#allocation2], 4
      %s25 = int_to_ptr.vmem [resolvable:$true] %s24
      %30 = dma.hbm_to_vmem [thread:$0]  %s2, 512, %s25, [#allocation3], 128, 128, 8
    $region13: #{tpu_custom_call.1} parent=1 // pred_fallthru
      _
    // Predicated region
    $region14: #{tpu_custom_call.1} parent=1 // pred_check
      _
    $region15: #{tpu_custom_call.1} parent=1 // pred_check_branch
      %32 = sbr.rel (0) target = $region17
    $region16: #{tpu_custom_call.1} parent=1 // pred_region
      _
    $region17: #{tpu_custom_call.1} parent=1 // pred_fallthru
      _
    // Predicated region
    $region18: #{tpu_custom_call.1} parent=1 // pred_check
      _
    $region19: #{tpu_custom_call.1} parent=1 // pred_check_branch
      %34 = sbr.rel (0) target = $region21
    $region20: #{tpu_custom_call.1} parent=1 // pred_region
      _
    $region21: #{tpu_custom_call.1} parent=1 // pred_fallthru
      _
    // Predicated region
    $region22: #{tpu_custom_call.1} parent=1 // pred_check
      _
    $region23: #{tpu_custom_call.1} parent=1 // pred_check_branch
      %36 = sbr.rel (0) target = $region25
    $region24: #{tpu_custom_call.1} parent=1 // pred_region
      %s38 = ssub.s32 512, 512
      %39 = vsyncadd [#allocation6], %s38
      %s40 = sshll.u32 [#allocation5], 4
      %s41 = int_to_ptr.vmem [resolvable:$true] %s40
      %46 = dma.hbm_to_vmem [thread:$0]  %s5, 512, %s41, [#allocation6], 128, 128, 8
    $region25: #{tpu_custom_call.1} parent=1 // pred_fallthru
      _
    // Predicated region
    $region26: #{tpu_custom_call.1} parent=1 // pred_check
      _
    $region27: #{tpu_custom_call.1} parent=1 // pred_check_branch
      %48 = sbr.rel (0) target = $region29
    $region28: #{tpu_custom_call.1} parent=1 // pred_region
      _
    $region29: #{tpu_custom_call.1} parent=1 // pred_fallthru
      _
    // Predicated region
    $region30: #{tpu_custom_call.1} parent=1 // pred_check
      _
    $region31: #{tpu_custom_call.1} parent=1 // pred_check_branch
      %50 = sbr.rel (0) target = $region33
    $region32: #{tpu_custom_call.1} parent=1 // pred_region
      %51 = dma.done [#allocation3], 512
    $region33: #{tpu_custom_call.1} parent=1 // pred_fallthru
      _
    // Predicated region
    $region34: #{tpu_custom_call.1} parent=1 // pred_check
      _
    $region35: #{tpu_custom_call.1} parent=1 // pred_check_branch
      %53 = sbr.rel (0) target = $region37
    $region36: #{tpu_custom_call.1} parent=1 // pred_region
      %54 = dma.done [#allocation6], 512
    $region37: #{tpu_custom_call.1} parent=1 // pred_fallthru
      _
    %v55 = vld [vmem:[%s0] sm:$0xff]
    %v56 = vld [vmem:[%s0 + $0x8] sm:$0xff]
    %v57 = vld [vmem:[%s1] sm:$0x1]
    %v58 = vld [vmem:[#allocation2] sm:$0xff]
    %v59 = vld [vmem:[#allocation2 + $0x8] sm:$0xff]
    %v60 = vld [vmem:[#allocation2 + $0x10] sm:$0xff]
    %v61 = vld [vmem:[#allocation2 + $0x18] sm:$0xff]
    %v62 = vld [vmem:[%s3] sm:$0x1]
    %v63 = vld [vmem:[%s4] sm:$0xff]
    %65 = vset.pattern.permute.xlu0 0
    %66 = vperm.xlu0 %65, %v55
    %v67 = vpop.permute.xlu0 %66
    %70 = vset.pattern.permute.xlu0 0
    %71 = vperm.xlu0 %70, %v56
    %v72 = vpop.permute.xlu0 %71
    %v75 = vlaneseq
    %v76 = vshrl.u32 %v75, 7
    %v77 = vsub.s32 0, %v76
    %v78 = vrot.slane %v57, %v77
    %v80 = vmul.f32 %v67, %v78
    %v81 = vmul.f32 %v72, %v78
    %vm82 = vcmask 261120
    %v84 = vsel %vm82, 0.0, 0
    %86 = vmatprep.subr.mxu0 0.0
    %87 = vmatpush1.msra.mxu0 0.0
    %88 = vmatprep.subr.mxu0 0.0
    %89 = vmatpush1.msra.mxu0 0.0
    %90 = vmatprep.subr.mxu0 0.0
    %91 = vmatpush1.msra.mxu0 0.0
    %92 = vmatprep.subr.mxu0 0.0
    %93 = vmatpush1.msra.mxu0 0.0
    %94 = vmatprep.subr.mxu0 0.0
    %95 = vmatpush1.msra.mxu0 0.0
    %96 = vmatprep.subr.mxu0 0.0
    %97 = vmatpush1.msra.mxu0 0.0
    %98 = vmatprep.subr.mxu0 0.0
    %99 = vmatpush1.msra.mxu0 0.0
    %100 = vmatprep.subr.mxu0 0.0
    %101 = vmatpush1.msra.mxu0 0.0
    %102 = vmatprep.subr.mxu0 0.0
    %103 = vmatpush1.msra.mxu0 0.0
    %104 = vmatprep.subr.mxu0 0.0
    %105 = vmatpush1.msra.mxu0 0.0
    %106 = vmatprep.subr.mxu0 0.0
    %107 = vmatpush1.msra.mxu0 0.0
    %108 = vmatprep.subr.mxu0 0.0
    %109 = vmatpush1.msra.mxu0 0.0
    %110 = vmatprep.subr.mxu0 0.0
    %111 = vmatpush1.msra.mxu0 %v61
    %112 = vmatprep.subr.mxu0 0.0
    %113 = vmatpush1.msra.mxu0 %v60
    %114 = vmatprep.subr.mxu0 0.0
    %115 = vmatpush1.msra.mxu0 %v59
    %116 = vmatprep.subr.mxu0 0.0
    %117 = vmatpush1.msra.mxu0 %v58
    %118 = vmatprep.subr.mxu0 0.0
    %119 = vmatpush2.msra.mxu0 0.0
    %120 = vmatprep.subr.mxu0 0.0
    %121 = vmatpush2.msra.mxu0 0.0
    %122 = vmatprep.subr.mxu0 0.0
    %123 = vmatpush2.msra.mxu0 0.0
    %124 = vmatprep.subr.mxu0 0.0
    %125 = vmatpush2.msra.mxu0 0.0
    %126 = vmatprep.subr.mxu0 0.0
    %127 = vmatpush2.msra.mxu0 0.0
    %128 = vmatprep.subr.mxu0 0.0
    %129 = vmatpush2.msra.mxu0 0.0
    %130 = vmatprep.subr.mxu0 0.0
    %131 = vmatpush2.msra.mxu0 0.0
    %132 = vmatprep.subr.mxu0 0.0
    %133 = vmatpush2.msra.mxu0 0.0
    %134 = vmatprep.subr.mxu0 0.0
    %135 = vmatpush2.msra.mxu0 0.0
    %136 = vmatprep.subr.mxu0 0.0
    %137 = vmatpush2.msra.mxu0 0.0
    %138 = vmatprep.subr.mxu0 0.0
    %139 = vmatpush2.msra.mxu0 0.0
    %140 = vmatprep.subr.mxu0 0.0
    %141 = vmatpush2.msra.mxu0 0.0
    %142 = vmatprep.subr.mxu0 0.0
    %143 = vmatpush2.msra.mxu0 0.0
    %144 = vmatprep.subr.mxu0 0.0
    %145 = vmatpush2.msra.mxu0 0.0
    %146 = vmatprep.subr.mxu0 0.0
    %147 = vmatpush2.msra.mxu0 0.0
    %148 = vmatprep.subr.mxu0 0.0
    %149 = vmatpush2.msra.mxu0 0.0
    %150 = vmatprep.mubr.f32.mxu0 0.0
    %151 = vmatmul.mubr.f32.gmra.mxu0 %v84
    %v152 = vpop.f32.mrf.mxu0
    %v153 = vadd.f32 0.0, %v152
    %v154 = vpop.f32.mrf.mxu0
    %155 = vdwg.mxu0
    %v157 = vrot.slane %v153, 1
    %v160 = vadd.f32 %v80, %v153
    %v161 = vadd.f32 %v81, %v157
    %v163 = vlaneseq
    %v164 = vshrl.u32 %v163, 7
    %v165 = vsub.s32 0, %v164
    %v166 = vrot.slane %v62, %v165
    %v168 = vadd.f32 %v160, %v166
    %v169 = vadd.f32 %v161, %v166
    %v170 = vxor.u32 %v168, 2147483648
    %v171 = vxor.u32 %v169, 2147483648
    %v172 = vmul.f32 %v170, 1.442695
    %v173 = vpow.pop %v172
    %v174 = vmul.f32 %v171, 1.442695
    %v175 = vpow.pop %v174
    %v176 = vadd.f32 %v173, 1.0
    %v177 = vadd.f32 %v175, 1.0
    %v178 = vrcp.pop %v176
    %v179 = vmul.f32 1.0, %v178
    %v180 = vrcp.pop %v177
    %v181 = vmul.f32 1.0, %v180
    %v182 = vtanh.pop %v168
    %v183 = vtanh.pop %v169
    %v184 = vmul.f32 %v179, 0.0
    %v185 = vmul.f32 %v181, 0.0
    %188 = vrot.lane.b32.xlu0 %v182, 64
    %v189 = vpop.permute.xlu0 %188
    %190 = vrot.lane.b32.xlu0 %v183, 64
    %v191 = vpop.permute.xlu0 %190
    %v194 = vmul.f32 %v179, %v189
    %v195 = vmul.f32 %v181, %v191
    %198 = vrot.lane.b32.xlu0 %v194, 32
    %v199 = vpop.permute.xlu0 %198
    %200 = vrot.lane.b32.xlu0 %v195, 32
    %v201 = vpop.permute.xlu0 %200
    %v204 = vadd.f32 %v184, %v199
    %v205 = vadd.f32 %v185, %v201
    %v206 = vtanh.pop %v204
    %v207 = vtanh.pop %v205
    %210 = vrot.lane.b32.xlu0 %v206, 64
    %v211 = vpop.permute.xlu0 %210
    %212 = vrot.lane.b32.xlu0 %v207, 64
    %v213 = vpop.permute.xlu0 %212
    %v216 = vmul.f32 %v179, %v211
    %v217 = vmul.f32 %v181, %v213
    %v220 = vrot.slane %v217, 7
    %vm221 = vcmask 1041409
    %v222 = vsel %vm221, %v220, %v216
    %223 = vrot.lane.b32.xlu0 %v222, 32
    %v224 = vpop.permute.xlu0 %223
    %v225 = vsel %vm82, %v224, 0
    %227 = vmatprep.subr.mxu0 0.0
    %228 = vmatpush1.msra.mxu0 0.0
    %229 = vmatprep.subr.mxu0 0.0
    %230 = vmatpush1.msra.mxu0 0.0
    %231 = vmatprep.subr.mxu0 0.0
    %232 = vmatpush1.msra.mxu0 0.0
    %233 = vmatprep.subr.mxu0 0.0
    %234 = vmatpush1.msra.mxu0 0.0
    %235 = vmatprep.subr.mxu0 0.0
    %236 = vmatpush1.msra.mxu0 0.0
    %237 = vmatprep.subr.mxu0 0.0
    %238 = vmatpush1.msra.mxu0 0.0
    %239 = vmatprep.subr.mxu0 0.0
    %240 = vmatpush1.msra.mxu0 0.0
    %241 = vmatprep.subr.mxu0 0.0
    %242 = vmatpush1.msra.mxu0 0.0
    %243 = vmatprep.subr.mxu0 0.0
    %244 = vmatpush1.msra.mxu0 0.0
    %245 = vmatprep.subr.mxu0 0.0
    %246 = vmatpush1.msra.mxu0 0.0
    %247 = vmatprep.subr.mxu0 0.0
    %248 = vmatpush1.msra.mxu0 0.0
    %249 = vmatprep.subr.mxu0 0.0
    %250 = vmatpush1.msra.mxu0 0.0
    %251 = vmatprep.subr.mxu0 0.0
    %252 = vmatpush1.msra.mxu0 %v61
    %253 = vmatprep.subr.mxu0 0.0
    %254 = vmatpush1.msra.mxu0 %v60
    %255 = vmatprep.subr.mxu0 0.0
    %256 = vmatpush1.msra.mxu0 %v59
    %257 = vmatprep.subr.mxu0 0.0
    %258 = vmatpush1.msra.mxu0 %v58
    %259 = vmatprep.subr.mxu0 0.0
    %260 = vmatpush2.msra.mxu0 0.0
    %261 = vmatprep.subr.mxu0 0.0
    %262 = vmatpush2.msra.mxu0 0.0
    %263 = vmatprep.subr.mxu0 0.0
    %264 = vmatpush2.msra.mxu0 0.0
    %265 = vmatprep.subr.mxu0 0.0
    %266 = vmatpush2.msra.mxu0 0.0
    %267 = vmatprep.subr.mxu0 0.0
    %268 = vmatpush2.msra.mxu0 0.0
    %269 = vmatprep.subr.mxu0 0.0
    %270 = vmatpush2.msra.mxu0 0.0
    %271 = vmatprep.subr.mxu0 0.0
    %272 = vmatpush2.msra.mxu0 0.0
    %273 = vmatprep.subr.mxu0 0.0
    %274 = vmatpush2.msra.mxu0 0.0
    %275 = vmatprep.subr.mxu0 0.0
    %276 = vmatpush2.msra.mxu0 0.0
    %277 = vmatprep.subr.mxu0 0.0
    %278 = vmatpush2.msra.mxu0 0.0
    %279 = vmatprep.subr.mxu0 0.0
    %280 = vmatpush2.msra.mxu0 0.0
    %281 = vmatprep.subr.mxu0 0.0
    %282 = vmatpush2.msra.mxu0 0.0
    %283 = vmatprep.subr.mxu0 0.0
    %284 = vmatpush2.msra.mxu0 0.0
    %285 = vmatprep.subr.mxu0 0.0
    %286 = vmatpush2.msra.mxu0 0.0
    %287 = vmatprep.subr.mxu0 0.0
    %288 = vmatpush2.msra.mxu0 0.0
    %289 = vmatprep.subr.mxu0 0.0
    %290 = vmatpush2.msra.mxu0 0.0
    %291 = vmatprep.mubr.f32.mxu0 0.0
    %292 = vmatmul.mubr.f32.gmra.mxu0 %v225
    %v293 = vpop.f32.mrf.mxu0
    %v294 = vadd.f32 0.0, %v293
    %v295 = vpop.f32.mrf.mxu0
    %296 = vdwg.mxu0
    %v298 = vrot.slane %v294, 7
    %v301 = vadd.f32 %v80, %v298
    %v302 = vadd.f32 %v81, %v294
    %v303 = vadd.f32 %v301, %v166
    %v304 = vadd.f32 %v302, %v166
    %v305 = vxor.u32 %v303, 2147483648
    %v306 = vxor.u32 %v304, 2147483648
    %v307 = vmul.f32 %v305, 1.442695
    %v308 = vpow.pop %v307
    %v309 = vmul.f32 %v306, 1.442695
    %v310 = vpow.pop %v309
    %v311 = vadd.f32 %v308, 1.0
    %v312 = vadd.f32 %v310, 1.0
    %v313 = vrcp.pop %v311
    %v314 = vmul.f32 1.0, %v313
    %v315 = vrcp.pop %v312
    %v316 = vmul.f32 1.0, %v315
    %v317 = vtanh.pop %v303
    %v318 = vtanh.pop %v304
    %v321 = vrot.slane %v204, 7
    %v322 = vrot.slane %v205, 7
    %v325 = vmul.f32 %v314, %v321
    %v326 = vmul.f32 %v316, %v322
    %329 = vrot.lane.b32.xlu0 %v317, 64
    %v330 = vpop.permute.xlu0 %329
    %331 = vrot.lane.b32.xlu0 %v318, 64
    %v332 = vpop.permute.xlu0 %331
    %v335 = vmul.f32 %v314, %v330
    %v336 = vmul.f32 %v316, %v332
    %339 = vrot.lane.b32.xlu0 %v335, 32
    %v340 = vpop.permute.xlu0 %339
    %341 = vrot.lane.b32.xlu0 %v336, 32
    %v342 = vpop.permute.xlu0 %341
    %v345 = vadd.f32 %v325, %v340
    %v346 = vadd.f32 %v326, %v342
    %v347 = vtanh.pop %v345
    %v348 = vtanh.pop %v346
    %351 = vrot.lane.b32.xlu0 %v347, 64
    %v352 = vpop.permute.xlu0 %351
    %353 = vrot.lane.b32.xlu0 %v348, 64
    %v354 = vpop.permute.xlu0 %353
    %v357 = vmul.f32 %v314, %v352
    %v358 = vmul.f32 %v316, %v354
    %v361 = vrot.slane %v357, 1
    %v362 = vsel %vm221, %v358, %v361
    %363 = vrot.lane.b32.xlu0 %v362, 32
    %v364 = vpop.permute.xlu0 %363
    %v365 = vsel %vm82, %v364, 0
    %367 = vmatprep.subr.mxu0 0.0
    %368 = vmatpush1.msra.mxu0 0.0
    %369 = vmatprep.subr.mxu0 0.0
    %370 = vmatpush1.msra.mxu0 0.0
    %371 = vmatprep.subr.mxu0 0.0
    %372 = vmatpush1.msra.mxu0 0.0
    %373 = vmatprep.subr.mxu0 0.0
    %374 = vmatpush1.msra.mxu0 0.0
    %375 = vmatprep.subr.mxu0 0.0
    %376 = vmatpush1.msra.mxu0 0.0
    %377 = vmatprep.subr.mxu0 0.0
    %378 = vmatpush1.msra.mxu0 0.0
    %379 = vmatprep.subr.mxu0 0.0
    %380 = vmatpush1.msra.mxu0 0.0
    %381 = vmatprep.subr.mxu0 0.0
    %382 = vmatpush1.msra.mxu0 0.0
    %383 = vmatprep.subr.mxu0 0.0
    %384 = vmatpush1.msra.mxu0 0.0
    %385 = vmatprep.subr.mxu0 0.0
    %386 = vmatpush1.msra.mxu0 0.0
    %387 = vmatprep.subr.mxu0 0.0
    %388 = vmatpush1.msra.mxu0 0.0
    %389 = vmatprep.subr.mxu0 0.0
    %390 = vmatpush1.msra.mxu0 0.0
    %391 = vmatprep.subr.mxu0 0.0
    %392 = vmatpush1.msra.mxu0 %v61
    %393 = vmatprep.subr.mxu0 0.0
    %394 = vmatpush1.msra.mxu0 %v60
    %395 = vmatprep.subr.mxu0 0.0
    %396 = vmatpush1.msra.mxu0 %v59
    %397 = vmatprep.subr.mxu0 0.0
    %398 = vmatpush1.msra.mxu0 %v58
    %399 = vmatprep.subr.mxu0 0.0
    %400 = vmatpush2.msra.mxu0 0.0
    %401 = vmatprep.subr.mxu0 0.0
    %402 = vmatpush2.msra.mxu0 0.0
    %403 = vmatprep.subr.mxu0 0.0
    %404 = vmatpush2.msra.mxu0 0.0
    %405 = vmatprep.subr.mxu0 0.0
    %406 = vmatpush2.msra.mxu0 0.0
    %407 = vmatprep.subr.mxu0 0.0
    %408 = vmatpush2.msra.mxu0 0.0
    %409 = vmatprep.subr.mxu0 0.0
    %410 = vmatpush2.msra.mxu0 0.0
    %411 = vmatprep.subr.mxu0 0.0
    %412 = vmatpush2.msra.mxu0 0.0
    %413 = vmatprep.subr.mxu0 0.0
    %414 = vmatpush2.msra.mxu0 0.0
    %415 = vmatprep.subr.mxu0 0.0
    %416 = vmatpush2.msra.mxu0 0.0
    %417 = vmatprep.subr.mxu0 0.0
    %418 = vmatpush2.msra.mxu0 0.0
    %419 = vmatprep.subr.mxu0 0.0
    %420 = vmatpush2.msra.mxu0 0.0
    %421 = vmatprep.subr.mxu0 0.0
    %422 = vmatpush2.msra.mxu0 0.0
    %423 = vmatprep.subr.mxu0 0.0
    %424 = vmatpush2.msra.mxu0 0.0
    %425 = vmatprep.subr.mxu0 0.0
    %426 = vmatpush2.msra.mxu0 0.0
    %427 = vmatprep.subr.mxu0 0.0
    %428 = vmatpush2.msra.mxu0 0.0
    %429 = vmatprep.subr.mxu0 0.0
    %430 = vmatpush2.msra.mxu0 0.0
    %431 = vmatprep.mubr.f32.mxu0 0.0
    %432 = vmatmul.mubr.f32.gmra.mxu0 %v365
    %v433 = vpop.f32.mrf.mxu0
    %v434 = vadd.f32 0.0, %v433
    %v435 = vpop.f32.mrf.mxu0
    %436 = vdwg.mxu0
    %v438 = vrot.slane %v434, 6
    %v439 = vrot.slane %v434, 7
    %v442 = vadd.f32 %v80, %v438
    %v443 = vadd.f32 %v81, %v439
    %v444 = vadd.f32 %v442, %v166
    %v445 = vadd.f32 %v443, %v166
    %v446 = vxor.u32 %v444, 2147483648
    %v447 = vxor.u32 %v445, 2147483648
    %v448 = vmul.f32 %v446, 1.442695
    %v449 = vpow.pop %v448
    %v450 = vmul.f32 %v447, 1.442695
    %v451 = vpow.pop %v450
    %v452 = vadd.f32 %v449, 1.0
    %v453 = vadd.f32 %v451, 1.0
    %v454 = vrcp.pop %v452
    %v455 = vmul.f32 1.0, %v454
    %v456 = vrcp.pop %v453
    %v457 = vmul.f32 1.0, %v456
    %v458 = vtanh.pop %v444
    %v459 = vtanh.pop %v445
    %v462 = vrot.slane %v345, 7
    %v463 = vrot.slane %v346, 7
    %v466 = vmul.f32 %v455, %v462
    %v467 = vmul.f32 %v457, %v463
    %470 = vrot.lane.b32.xlu0 %v458, 64
    %v471 = vpop.permute.xlu0 %470
    %472 = vrot.lane.b32.xlu0 %v459, 64
    %v473 = vpop.permute.xlu0 %472
    %v476 = vmul.f32 %v455, %v471
    %v477 = vmul.f32 %v457, %v473
    %480 = vrot.lane.b32.xlu0 %v476, 32
    %v481 = vpop.permute.xlu0 %480
    %482 = vrot.lane.b32.xlu0 %v477, 32
    %v483 = vpop.permute.xlu0 %482
    %v486 = vadd.f32 %v466, %v481
    %v487 = vadd.f32 %v467, %v483
    %v488 = vtanh.pop %v486
    %v489 = vtanh.pop %v487
    %492 = vrot.lane.b32.xlu0 %v488, 64
    %v493 = vpop.permute.xlu0 %492
    %494 = vrot.lane.b32.xlu0 %v489, 64
    %v495 = vpop.permute.xlu0 %494
    %v498 = vmul.f32 %v455, %v493
    %v499 = vmul.f32 %v457, %v495
    %v502 = vrot.slane %v498, 2
    %v503 = vrot.slane %v499, 1
    %v504 = vsel %vm221, %v503, %v502
    %505 = vrot.lane.b32.xlu0 %v504, 32
    %v506 = vpop.permute.xlu0 %505
    %v507 = vsel %vm82, %v506, 0
    %509 = vmatprep.subr.mxu0 0.0
    %510 = vmatpush1.msra.mxu0 0.0
    %511 = vmatprep.subr.mxu0 0.0
    %512 = vmatpush1.msra.mxu0 0.0
    %513 = vmatprep.subr.mxu0 0.0
    %514 = vmatpush1.msra.mxu0 0.0
    %515 = vmatprep.subr.mxu0 0.0
    %516 = vmatpush1.msra.mxu0 0.0
    %517 = vmatprep.subr.mxu0 0.0
    %518 = vmatpush1.msra.mxu0 0.0
    %519 = vmatprep.subr.mxu0 0.0
    %520 = vmatpush1.msra.mxu0 0.0
    %521 = vmatprep.subr.mxu0 0.0
    %522 = vmatpush1.msra.mxu0 0.0
    %523 = vmatprep.subr.mxu0 0.0
    %524 = vmatpush1.msra.mxu0 0.0
    %525 = vmatprep.subr.mxu0 0.0
    %526 = vmatpush1.msra.mxu0 0.0
    %527 = vmatprep.subr.mxu0 0.0
    %528 = vmatpush1.msra.mxu0 0.0
    %529 = vmatprep.subr.mxu0 0.0
    %530 = vmatpush1.msra.mxu0 0.0
    %531 = vmatprep.subr.mxu0 0.0
    %532 = vmatpush1.msra.mxu0 0.0
    %533 = vmatprep.subr.mxu0 0.0
    %534 = vmatpush1.msra.mxu0 %v61
    %535 = vmatprep.subr.mxu0 0.0
    %536 = vmatpush1.msra.mxu0 %v60
    %537 = vmatprep.subr.mxu0 0.0
    %538 = vmatpush1.msra.mxu0 %v59
    %539 = vmatprep.subr.mxu0 0.0
    %540 = vmatpush1.msra.mxu0 %v58
    %541 = vmatprep.subr.mxu0 0.0
    %542 = vmatpush2.msra.mxu0 0.0
    %543 = vmatprep.subr.mxu0 0.0
    %544 = vmatpush2.msra.mxu0 0.0
    %545 = vmatprep.subr.mxu0 0.0
    %546 = vmatpush2.msra.mxu0 0.0
    %547 = vmatprep.subr.mxu0 0.0
    %548 = vmatpush2.msra.mxu0 0.0
    %549 = vmatprep.subr.mxu0 0.0
    %550 = vmatpush2.msra.mxu0 0.0
    %551 = vmatprep.subr.mxu0 0.0
    %552 = vmatpush2.msra.mxu0 0.0
    %553 = vmatprep.subr.mxu0 0.0
    %554 = vmatpush2.msra.mxu0 0.0
    %555 = vmatprep.subr.mxu0 0.0
    %556 = vmatpush2.msra.mxu0 0.0
    %557 = vmatprep.subr.mxu0 0.0
    %558 = vmatpush2.msra.mxu0 0.0
    %559 = vmatprep.subr.mxu0 0.0
    %560 = vmatpush2.msra.mxu0 0.0
    %561 = vmatprep.subr.mxu0 0.0
    %562 = vmatpush2.msra.mxu0 0.0
    %563 = vmatprep.subr.mxu0 0.0
    %564 = vmatpush2.msra.mxu0 0.0
    %565 = vmatprep.subr.mxu0 0.0
    %566 = vmatpush2.msra.mxu0 0.0
    %567 = vmatprep.subr.mxu0 0.0
    %568 = vmatpush2.msra.mxu0 0.0
    %569 = vmatprep.subr.mxu0 0.0
    %570 = vmatpush2.msra.mxu0 0.0
    %571 = vmatprep.subr.mxu0 0.0
    %572 = vmatpush2.msra.mxu0 0.0
    %573 = vmatprep.mubr.f32.mxu0 0.0
    %574 = vmatmul.mubr.f32.gmra.mxu0 %v507
    %v575 = vpop.f32.mrf.mxu0
    %v576 = vadd.f32 0.0, %v575
    %v577 = vpop.f32.mrf.mxu0
    %578 = vdwg.mxu0
    %v580 = vrot.slane %v576, 5
    %v581 = vrot.slane %v576, 6
    %v584 = vadd.f32 %v80, %v580
    %v585 = vadd.f32 %v81, %v581
    %v586 = vadd.f32 %v584, %v166
    %v587 = vadd.f32 %v585, %v166
    %v588 = vxor.u32 %v586, 2147483648
    %v589 = vxor.u32 %v587, 2147483648
    %v590 = vmul.f32 %v588, 1.442695
    %v591 = vpow.pop %v590
    %v592 = vmul.f32 %v589, 1.442695
    %v593 = vpow.pop %v592
    %v594 = vadd.f32 %v591, 1.0
    %v595 = vadd.f32 %v593, 1.0
    %v596 = vrcp.pop %v594
    %v597 = vmul.f32 1.0, %v596
    %v598 = vrcp.pop %v595
    %v599 = vmul.f32 1.0, %v598
    %v600 = vtanh.pop %v586
    %v601 = vtanh.pop %v587
    %v604 = vrot.slane %v486, 7
    %v605 = vrot.slane %v487, 7
    %v608 = vmul.f32 %v597, %v604
    %v609 = vmul.f32 %v599, %v605
    %612 = vrot.lane.b32.xlu0 %v600, 64
    %v613 = vpop.permute.xlu0 %612
    %614 = vrot.lane.b32.xlu0 %v601, 64
    %v615 = vpop.permute.xlu0 %614
    %v618 = vmul.f32 %v597, %v613
    %v619 = vmul.f32 %v599, %v615
    %622 = vrot.lane.b32.xlu0 %v618, 32
    %v623 = vpop.permute.xlu0 %622
    %624 = vrot.lane.b32.xlu0 %v619, 32
    %v625 = vpop.permute.xlu0 %624
    %v628 = vadd.f32 %v608, %v623
    %v629 = vadd.f32 %v609, %v625
    %v630 = vtanh.pop %v628
    %v631 = vtanh.pop %v629
    %634 = vrot.lane.b32.xlu0 %v630, 64
    %v635 = vpop.permute.xlu0 %634
    %636 = vrot.lane.b32.xlu0 %v631, 64
    %v637 = vpop.permute.xlu0 %636
    %v640 = vmul.f32 %v597, %v635
    %v641 = vmul.f32 %v599, %v637
    %v644 = vrot.slane %v640, 3
    %v645 = vrot.slane %v641, 2
    %v646 = vsel %vm221, %v645, %v644
    %647 = vrot.lane.b32.xlu0 %v646, 32
    %v648 = vpop.permute.xlu0 %647
    %v649 = vsel %vm82, %v648, 0
    %651 = vmatprep.subr.mxu0 0.0
    %652 = vmatpush1.msra.mxu0 0.0
    %653 = vmatprep.subr.mxu0 0.0
    %654 = vmatpush1.msra.mxu0 0.0
    %655 = vmatprep.subr.mxu0 0.0
    %656 = vmatpush1.msra.mxu0 0.0
    %657 = vmatprep.subr.mxu0 0.0
    %658 = vmatpush1.msra.mxu0 0.0
    %659 = vmatprep.subr.mxu0 0.0
    %660 = vmatpush1.msra.mxu0 0.0
    %661 = vmatprep.subr.mxu0 0.0
    %662 = vmatpush1.msra.mxu0 0.0
    %663 = vmatprep.subr.mxu0 0.0
    %664 = vmatpush1.msra.mxu0 0.0
    %665 = vmatprep.subr.mxu0 0.0
    %666 = vmatpush1.msra.mxu0 0.0
    %667 = vmatprep.subr.mxu0 0.0
    %668 = vmatpush1.msra.mxu0 0.0
    %669 = vmatprep.subr.mxu0 0.0
    %670 = vmatpush1.msra.mxu0 0.0
    %671 = vmatprep.subr.mxu0 0.0
    %672 = vmatpush1.msra.mxu0 0.0
    %673 = vmatprep.subr.mxu0 0.0
    %674 = vmatpush1.msra.mxu0 0.0
    %675 = vmatprep.subr.mxu0 0.0
    %676 = vmatpush1.msra.mxu0 %v61
    %677 = vmatprep.subr.mxu0 0.0
    %678 = vmatpush1.msra.mxu0 %v60
    %679 = vmatprep.subr.mxu0 0.0
    %680 = vmatpush1.msra.mxu0 %v59
    %681 = vmatprep.subr.mxu0 0.0
    %682 = vmatpush1.msra.mxu0 %v58
    %683 = vmatprep.subr.mxu0 0.0
    %684 = vmatpush2.msra.mxu0 0.0
    %685 = vmatprep.subr.mxu0 0.0
    %686 = vmatpush2.msra.mxu0 0.0
    %687 = vmatprep.subr.mxu0 0.0
    %688 = vmatpush2.msra.mxu0 0.0
    %689 = vmatprep.subr.mxu0 0.0
    %690 = vmatpush2.msra.mxu0 0.0
    %691 = vmatprep.subr.mxu0 0.0
    %692 = vmatpush2.msra.mxu0 0.0
    %693 = vmatprep.subr.mxu0 0.0
    %694 = vmatpush2.msra.mxu0 0.0
    %695 = vmatprep.subr.mxu0 0.0
    %696 = vmatpush2.msra.mxu0 0.0
    %697 = vmatprep.subr.mxu0 0.0
    %698 = vmatpush2.msra.mxu0 0.0
    %699 = vmatprep.subr.mxu0 0.0
    %700 = vmatpush2.msra.mxu0 0.0
    %701 = vmatprep.subr.mxu0 0.0
    %702 = vmatpush2.msra.mxu0 0.0
    %703 = vmatprep.subr.mxu0 0.0
    %704 = vmatpush2.msra.mxu0 0.0
    %705 = vmatprep.subr.mxu0 0.0
    %706 = vmatpush2.msra.mxu0 0.0
    %707 = vmatprep.subr.mxu0 0.0
    %708 = vmatpush2.msra.mxu0 0.0
    %709 = vmatprep.subr.mxu0 0.0
    %710 = vmatpush2.msra.mxu0 0.0
    %711 = vmatprep.subr.mxu0 0.0
    %712 = vmatpush2.msra.mxu0 0.0
    %713 = vmatprep.subr.mxu0 0.0
    %714 = vmatpush2.msra.mxu0 0.0
    %715 = vmatprep.mubr.f32.mxu0 0.0
    %716 = vmatmul.mubr.f32.gmra.mxu0 %v649
    %v717 = vpop.f32.mrf.mxu0
    %v718 = vadd.f32 0.0, %v717
    %v719 = vpop.f32.mrf.mxu0
    %720 = vdwg.mxu0
    %v722 = vrot.slane %v718, 4
    %v723 = vrot.slane %v718, 5
    %v726 = vadd.f32 %v80, %v722
    %v727 = vadd.f32 %v81, %v723
    %v728 = vadd.f32 %v726, %v166
    %v729 = vadd.f32 %v727, %v166
    %v730 = vxor.u32 %v728, 2147483648
    %v731 = vxor.u32 %v729, 2147483648
    %v732 = vmul.f32 %v730, 1.442695
    %v733 = vpow.pop %v732
    %v734 = vmul.f32 %v731, 1.442695
    %v735 = vpow.pop %v734
    %v736 = vadd.f32 %v733, 1.0
    %v737 = vadd.f32 %v735, 1.0
    %v738 = vrcp.pop %v736
    %v739 = vmul.f32 1.0, %v738
    %v740 = vrcp.pop %v737
    %v741 = vmul.f32 1.0, %v740
    %v742 = vtanh.pop %v728
    %v743 = vtanh.pop %v729
    %v746 = vrot.slane %v628, 7
    %v747 = vrot.slane %v629, 7
    %v750 = vmul.f32 %v739, %v746
    %v751 = vmul.f32 %v741, %v747
    %754 = vrot.lane.b32.xlu0 %v742, 64
    %v755 = vpop.permute.xlu0 %754
    %756 = vrot.lane.b32.xlu0 %v743, 64
    %v757 = vpop.permute.xlu0 %756
    %v760 = vmul.f32 %v739, %v755
    %v761 = vmul.f32 %v741, %v757
    %764 = vrot.lane.b32.xlu0 %v760, 32
    %v765 = vpop.permute.xlu0 %764
    %766 = vrot.lane.b32.xlu0 %v761, 32
    %v767 = vpop.permute.xlu0 %766
    %v770 = vadd.f32 %v750, %v765
    %v771 = vadd.f32 %v751, %v767
    %v772 = vtanh.pop %v770
    %v773 = vtanh.pop %v771
    %776 = vrot.lane.b32.xlu0 %v772, 64
    %v777 = vpop.permute.xlu0 %776
    %778 = vrot.lane.b32.xlu0 %v773, 64
    %v779 = vpop.permute.xlu0 %778
    %v782 = vmul.f32 %v739, %v777
    %v783 = vmul.f32 %v741, %v779
    %v786 = vrot.slane %v782, 4
    %v787 = vrot.slane %v783, 3
    %v788 = vsel %vm221, %v787, %v786
    %789 = vrot.lane.b32.xlu0 %v788, 32
    %v790 = vpop.permute.xlu0 %789
    %v791 = vsel %vm82, %v790, 0
    %793 = vmatprep.subr.mxu0 0.0
    %794 = vmatpush1.msra.mxu0 0.0
    %795 = vmatprep.subr.mxu0 0.0
    %796 = vmatpush1.msra.mxu0 0.0
    %797 = vmatprep.subr.mxu0 0.0
    %798 = vmatpush1.msra.mxu0 0.0
    %799 = vmatprep.subr.mxu0 0.0
    %800 = vmatpush1.msra.mxu0 0.0
    %801 = vmatprep.subr.mxu0 0.0
    %802 = vmatpush1.msra.mxu0 0.0
    %803 = vmatprep.subr.mxu0 0.0
    %804 = vmatpush1.msra.mxu0 0.0
    %805 = vmatprep.subr.mxu0 0.0
    %806 = vmatpush1.msra.mxu0 0.0
    %807 = vmatprep.subr.mxu0 0.0
    %808 = vmatpush1.msra.mxu0 0.0
    %809 = vmatprep.subr.mxu0 0.0
    %810 = vmatpush1.msra.mxu0 0.0
    %811 = vmatprep.subr.mxu0 0.0
    %812 = vmatpush1.msra.mxu0 0.0
    %813 = vmatprep.subr.mxu0 0.0
    %814 = vmatpush1.msra.mxu0 0.0
    %815 = vmatprep.subr.mxu0 0.0
    %816 = vmatpush1.msra.mxu0 0.0
    %817 = vmatprep.subr.mxu0 0.0
    %818 = vmatpush1.msra.mxu0 %v61
    %819 = vmatprep.subr.mxu0 0.0
    %820 = vmatpush1.msra.mxu0 %v60
    %821 = vmatprep.subr.mxu0 0.0
    %822 = vmatpush1.msra.mxu0 %v59
    %823 = vmatprep.subr.mxu0 0.0
    %824 = vmatpush1.msra.mxu0 %v58
    %825 = vmatprep.subr.mxu0 0.0
    %826 = vmatpush2.msra.mxu0 0.0
    %827 = vmatprep.subr.mxu0 0.0
    %828 = vmatpush2.msra.mxu0 0.0
    %829 = vmatprep.subr.mxu0 0.0
    %830 = vmatpush2.msra.mxu0 0.0
    %831 = vmatprep.subr.mxu0 0.0
    %832 = vmatpush2.msra.mxu0 0.0
    %833 = vmatprep.subr.mxu0 0.0
    %834 = vmatpush2.msra.mxu0 0.0
    %835 = vmatprep.subr.mxu0 0.0
    %836 = vmatpush2.msra.mxu0 0.0
    %837 = vmatprep.subr.mxu0 0.0
    %838 = vmatpush2.msra.mxu0 0.0
    %839 = vmatprep.subr.mxu0 0.0
    %840 = vmatpush2.msra.mxu0 0.0
    %841 = vmatprep.subr.mxu0 0.0
    %842 = vmatpush2.msra.mxu0 0.0
    %843 = vmatprep.subr.mxu0 0.0
    %844 = vmatpush2.msra.mxu0 0.0
    %845 = vmatprep.subr.mxu0 0.0
    %846 = vmatpush2.msra.mxu0 0.0
    %847 = vmatprep.subr.mxu0 0.0
    %848 = vmatpush2.msra.mxu0 0.0
    %849 = vmatprep.subr.mxu0 0.0
    %850 = vmatpush2.msra.mxu0 0.0
    %851 = vmatprep.subr.mxu0 0.0
    %852 = vmatpush2.msra.mxu0 0.0
    %853 = vmatprep.subr.mxu0 0.0
    %854 = vmatpush2.msra.mxu0 0.0
    %855 = vmatprep.subr.mxu0 0.0
    %856 = vmatpush2.msra.mxu0 0.0
    %857 = vmatprep.mubr.f32.mxu0 0.0
    %858 = vmatmul.mubr.f32.gmra.mxu0 %v791
    %v859 = vpop.f32.mrf.mxu0
    %v860 = vadd.f32 0.0, %v859
    %v861 = vpop.f32.mrf.mxu0
    %862 = vdwg.mxu0
    %v864 = vrot.slane %v860, 3
    %v865 = vrot.slane %v860, 4
    %v868 = vadd.f32 %v80, %v864
    %v869 = vadd.f32 %v81, %v865
    %v870 = vadd.f32 %v868, %v166
    %v871 = vadd.f32 %v869, %v166
    %v872 = vxor.u32 %v870, 2147483648
    %v873 = vxor.u32 %v871, 2147483648
    %v874 = vmul.f32 %v872, 1.442695
    %v875 = vpow.pop %v874
    %v876 = vmul.f32 %v873, 1.442695
    %v877 = vpow.pop %v876
    %v878 = vadd.f32 %v875, 1.0
    %v879 = vadd.f32 %v877, 1.0
    %v880 = vrcp.pop %v878
    %v881 = vmul.f32 1.0, %v880
    %v882 = vrcp.pop %v879
    %v883 = vmul.f32 1.0, %v882
    %v884 = vtanh.pop %v870
    %v885 = vtanh.pop %v871
    %v888 = vrot.slane %v770, 7
    %v889 = vrot.slane %v771, 7
    %v892 = vmul.f32 %v881, %v888
    %v893 = vmul.f32 %v883, %v889
    %896 = vrot.lane.b32.xlu0 %v884, 64
    %v897 = vpop.permute.xlu0 %896
    %898 = vrot.lane.b32.xlu0 %v885, 64
    %v899 = vpop.permute.xlu0 %898
    %v902 = vmul.f32 %v881, %v897
    %v903 = vmul.f32 %v883, %v899
    %906 = vrot.lane.b32.xlu0 %v902, 32
    %v907 = vpop.permute.xlu0 %906
    %908 = vrot.lane.b32.xlu0 %v903, 32
    %v909 = vpop.permute.xlu0 %908
    %v912 = vadd.f32 %v892, %v907
    %v913 = vadd.f32 %v893, %v909
    %v914 = vtanh.pop %v912
    %v915 = vtanh.pop %v913
    %918 = vrot.lane.b32.xlu0 %v914, 64
    %v919 = vpop.permute.xlu0 %918
    %920 = vrot.lane.b32.xlu0 %v915, 64
    %v921 = vpop.permute.xlu0 %920
    %v924 = vmul.f32 %v881, %v919
    %v925 = vmul.f32 %v883, %v921
    %v928 = vrot.slane %v924, 5
    %v929 = vrot.slane %v925, 4
    %v930 = vsel %vm221, %v929, %v928
    %931 = vrot.lane.b32.xlu0 %v930, 32
    %v932 = vpop.permute.xlu0 %931
    %v933 = vsel %vm82, %v932, 0
    %935 = vmatprep.subr.mxu0 0.0
    %936 = vmatpush1.msra.mxu0 0.0
    %937 = vmatprep.subr.mxu0 0.0
    %938 = vmatpush1.msra.mxu0 0.0
    %939 = vmatprep.subr.mxu0 0.0
    %940 = vmatpush1.msra.mxu0 0.0
    %941 = vmatprep.subr.mxu0 0.0
    %942 = vmatpush1.msra.mxu0 0.0
    %943 = vmatprep.subr.mxu0 0.0
    %944 = vmatpush1.msra.mxu0 0.0
    %945 = vmatprep.subr.mxu0 0.0
    %946 = vmatpush1.msra.mxu0 0.0
    %947 = vmatprep.subr.mxu0 0.0
    %948 = vmatpush1.msra.mxu0 0.0
    %949 = vmatprep.subr.mxu0 0.0
    %950 = vmatpush1.msra.mxu0 0.0
    %951 = vmatprep.subr.mxu0 0.0
    %952 = vmatpush1.msra.mxu0 0.0
    %953 = vmatprep.subr.mxu0 0.0
    %954 = vmatpush1.msra.mxu0 0.0
    %955 = vmatprep.subr.mxu0 0.0
    %956 = vmatpush1.msra.mxu0 0.0
    %957 = vmatprep.subr.mxu0 0.0
    %958 = vmatpush1.msra.mxu0 0.0
    %959 = vmatprep.subr.mxu0 0.0
    %960 = vmatpush1.msra.mxu0 %v61
    %961 = vmatprep.subr.mxu0 0.0
    %962 = vmatpush1.msra.mxu0 %v60
    %963 = vmatprep.subr.mxu0 0.0
    %964 = vmatpush1.msra.mxu0 %v59
    %965 = vmatprep.subr.mxu0 0.0
    %966 = vmatpush1.msra.mxu0 %v58
    %967 = vmatprep.subr.mxu0 0.0
    %968 = vmatpush2.msra.mxu0 0.0
    %969 = vmatprep.subr.mxu0 0.0
    %970 = vmatpush2.msra.mxu0 0.0
    %971 = vmatprep.subr.mxu0 0.0
    %972 = vmatpush2.msra.mxu0 0.0
    %973 = vmatprep.subr.mxu0 0.0
    %974 = vmatpush2.msra.mxu0 0.0
    %975 = vmatprep.subr.mxu0 0.0
    %976 = vmatpush2.msra.mxu0 0.0
    %977 = vmatprep.subr.mxu0 0.0
    %978 = vmatpush2.msra.mxu0 0.0
    %979 = vmatprep.subr.mxu0 0.0
    %980 = vmatpush2.msra.mxu0 0.0
    %981 = vmatprep.subr.mxu0 0.0
    %982 = vmatpush2.msra.mxu0 0.0
    %983 = vmatprep.subr.mxu0 0.0
    %984 = vmatpush2.msra.mxu0 0.0
    %985 = vmatprep.subr.mxu0 0.0
    %986 = vmatpush2.msra.mxu0 0.0
    %987 = vmatprep.subr.mxu0 0.0
    %988 = vmatpush2.msra.mxu0 0.0
    %989 = vmatprep.subr.mxu0 0.0
    %990 = vmatpush2.msra.mxu0 0.0
    %991 = vmatprep.subr.mxu0 0.0
    %992 = vmatpush2.msra.mxu0 0.0
    %993 = vmatprep.subr.mxu0 0.0
    %994 = vmatpush2.msra.mxu0 0.0
    %995 = vmatprep.subr.mxu0 0.0
    %996 = vmatpush2.msra.mxu0 0.0
    %997 = vmatprep.subr.mxu0 0.0
    %998 = vmatpush2.msra.mxu0 0.0
    %999 = vmatprep.mubr.f32.mxu0 0.0
    %1000 = vmatmul.mubr.f32.gmra.mxu0 %v933
    %v1001 = vpop.f32.mrf.mxu0
    %v1002 = vadd.f32 0.0, %v1001
    %v1003 = vpop.f32.mrf.mxu0
    %1004 = vdwg.mxu0
    %v1006 = vrot.slane %v1002, 2
    %v1007 = vrot.slane %v1002, 3
    %v1010 = vadd.f32 %v80, %v1006
    %v1011 = vadd.f32 %v81, %v1007
    %v1012 = vadd.f32 %v1010, %v166
    %v1013 = vadd.f32 %v1011, %v166
    %v1014 = vxor.u32 %v1012, 2147483648
    %v1015 = vxor.u32 %v1013, 2147483648
    %v1016 = vmul.f32 %v1014, 1.442695
    %v1017 = vpow.pop %v1016
    %v1018 = vmul.f32 %v1015, 1.442695
    %v1019 = vpow.pop %v1018
    %v1020 = vadd.f32 %v1017, 1.0
    %v1021 = vadd.f32 %v1019, 1.0
    %v1022 = vrcp.pop %v1020
    %v1023 = vmul.f32 1.0, %v1022
    %v1024 = vrcp.pop %v1021
    %v1025 = vmul.f32 1.0, %v1024
    %v1026 = vtanh.pop %v1012
    %v1027 = vtanh.pop %v1013
    %v1030 = vrot.slane %v912, 7
    %v1031 = vrot.slane %v913, 7
    %v1034 = vmul.f32 %v1023, %v1030
    %v1035 = vmul.f32 %v1025, %v1031
    %1038 = vrot.lane.b32.xlu0 %v1026, 64
    %v1039 = vpop.permute.xlu0 %1038
    %1040 = vrot.lane.b32.xlu0 %v1027, 64
    %v1041 = vpop.permute.xlu0 %1040
    %v1044 = vmul.f32 %v1023, %v1039
    %v1045 = vmul.f32 %v1025, %v1041
    %1048 = vrot.lane.b32.xlu0 %v1044, 32
    %v1049 = vpop.permute.xlu0 %1048
    %1050 = vrot.lane.b32.xlu0 %v1045, 32
    %v1051 = vpop.permute.xlu0 %1050
    %v1054 = vadd.f32 %v1034, %v1049
    %v1055 = vadd.f32 %v1035, %v1051
    %v1056 = vtanh.pop %v1054
    %v1057 = vtanh.pop %v1055
    %1060 = vrot.lane.b32.xlu0 %v1056, 64
    %v1061 = vpop.permute.xlu0 %1060
    %1062 = vrot.lane.b32.xlu0 %v1057, 64
    %v1063 = vpop.permute.xlu0 %1062
    %v1066 = vmul.f32 %v1023, %v1061
    %v1067 = vmul.f32 %v1025, %v1063
    %v1070 = vrot.slane %v1066, 6
    %v1071 = vrot.slane %v1067, 5
    %v1072 = vsel %vm221, %v1071, %v1070
    %1073 = vrot.lane.b32.xlu0 %v1072, 32
    %v1074 = vpop.permute.xlu0 %1073
    %v1075 = vsel %vm82, %v1074, 0
    %1077 = vmatprep.subr.mxu0 0.0
    %1078 = vmatpush1.msra.mxu0 0.0
    %1079 = vmatprep.subr.mxu0 0.0
    %1080 = vmatpush1.msra.mxu0 0.0
    %1081 = vmatprep.subr.mxu0 0.0
    %1082 = vmatpush1.msra.mxu0 0.0
    %1083 = vmatprep.subr.mxu0 0.0
    %1084 = vmatpush1.msra.mxu0 0.0
    %1085 = vmatprep.subr.mxu0 0.0
    %1086 = vmatpush1.msra.mxu0 0.0
    %1087 = vmatprep.subr.mxu0 0.0
    %1088 = vmatpush1.msra.mxu0 0.0
    %1089 = vmatprep.subr.mxu0 0.0
    %1090 = vmatpush1.msra.mxu0 0.0
    %1091 = vmatprep.subr.mxu0 0.0
    %1092 = vmatpush1.msra.mxu0 0.0
    %1093 = vmatprep.subr.mxu0 0.0
    %1094 = vmatpush1.msra.mxu0 0.0
    %1095 = vmatprep.subr.mxu0 0.0
    %1096 = vmatpush1.msra.mxu0 0.0
    %1097 = vmatprep.subr.mxu0 0.0
    %1098 = vmatpush1.msra.mxu0 0.0
    %1099 = vmatprep.subr.mxu0 0.0
    %1100 = vmatpush1.msra.mxu0 0.0
    %1101 = vmatprep.subr.mxu0 0.0
    %1102 = vmatpush1.msra.mxu0 %v61
    %1103 = vmatprep.subr.mxu0 0.0
    %1104 = vmatpush1.msra.mxu0 %v60
    %1105 = vmatprep.subr.mxu0 0.0
    %1106 = vmatpush1.msra.mxu0 %v59
    %1107 = vmatprep.subr.mxu0 0.0
    %1108 = vmatpush1.msra.mxu0 %v58
    %1109 = vmatprep.subr.mxu0 0.0
    %1110 = vmatpush2.msra.mxu0 0.0
    %1111 = vmatprep.subr.mxu0 0.0
    %1112 = vmatpush2.msra.mxu0 0.0
    %1113 = vmatprep.subr.mxu0 0.0
    %1114 = vmatpush2.msra.mxu0 0.0
    %1115 = vmatprep.subr.mxu0 0.0
    %1116 = vmatpush2.msra.mxu0 0.0
    %1117 = vmatprep.subr.mxu0 0.0
    %1118 = vmatpush2.msra.mxu0 0.0
    %1119 = vmatprep.subr.mxu0 0.0
    %1120 = vmatpush2.msra.mxu0 0.0
    %1121 = vmatprep.subr.mxu0 0.0
    %1122 = vmatpush2.msra.mxu0 0.0
    %1123 = vmatprep.subr.mxu0 0.0
    %1124 = vmatpush2.msra.mxu0 0.0
    %1125 = vmatprep.subr.mxu0 0.0
    %1126 = vmatpush2.msra.mxu0 0.0
    %1127 = vmatprep.subr.mxu0 0.0
    %1128 = vmatpush2.msra.mxu0 0.0
    %1129 = vmatprep.subr.mxu0 0.0
    %1130 = vmatpush2.msra.mxu0 0.0
    %1131 = vmatprep.subr.mxu0 0.0
    %1132 = vmatpush2.msra.mxu0 0.0
    %1133 = vmatprep.subr.mxu0 0.0
    %1134 = vmatpush2.msra.mxu0 0.0
    %1135 = vmatprep.subr.mxu0 0.0
    %1136 = vmatpush2.msra.mxu0 0.0
    %1137 = vmatprep.subr.mxu0 0.0
    %1138 = vmatpush2.msra.mxu0 0.0
    %1139 = vmatprep.subr.mxu0 0.0
    %1140 = vmatpush2.msra.mxu0 0.0
    %1141 = vmatprep.mubr.f32.mxu0 0.0
    %1142 = vmatmul.mubr.f32.gmra.mxu0 %v1075
    %v1143 = vpop.f32.mrf.mxu0
    %v1144 = vadd.f32 0.0, %v1143
    %v1145 = vpop.f32.mrf.mxu0
    %1146 = vdwg.mxu0
    %v1148 = vrot.slane %v1144, 1
    %v1149 = vrot.slane %v1144, 2
    %v1152 = vadd.f32 %v80, %v1148
    %v1153 = vadd.f32 %v81, %v1149
    %v1154 = vadd.f32 %v1152, %v166
    %v1155 = vadd.f32 %v1153, %v166
    %v1156 = vxor.u32 %v1154, 2147483648
    %v1157 = vxor.u32 %v1155, 2147483648
    %v1158 = vmul.f32 %v1156, 1.442695
    %v1159 = vpow.pop %v1158
    %v1160 = vmul.f32 %v1157, 1.442695
    %v1161 = vpow.pop %v1160
    %v1162 = vadd.f32 %v1159, 1.0
    %v1163 = vadd.f32 %v1161, 1.0
    %v1164 = vrcp.pop %v1162
    %v1165 = vmul.f32 1.0, %v1164
    %v1166 = vrcp.pop %v1163
    %v1167 = vmul.f32 1.0, %v1166
    %v1168 = vtanh.pop %v1154
    %v1169 = vtanh.pop %v1155
    %v1172 = vrot.slane %v1054, 7
    %v1173 = vrot.slane %v1055, 7
    %v1176 = vmul.f32 %v1165, %v1172
    %v1177 = vmul.f32 %v1167, %v1173
    %1180 = vrot.lane.b32.xlu0 %v1168, 64
    %v1181 = vpop.permute.xlu0 %1180
    %1182 = vrot.lane.b32.xlu0 %v1169, 64
    %v1183 = vpop.permute.xlu0 %1182
    %v1186 = vmul.f32 %v1165, %v1181
    %v1187 = vmul.f32 %v1167, %v1183
    %1190 = vrot.lane.b32.xlu0 %v1186, 32
    %v1191 = vpop.permute.xlu0 %1190
    %1192 = vrot.lane.b32.xlu0 %v1187, 32
    %v1193 = vpop.permute.xlu0 %1192
    %v1196 = vadd.f32 %v1176, %v1191
    %v1197 = vadd.f32 %v1177, %v1193
    %v1198 = vtanh.pop %v1196
    %v1199 = vtanh.pop %v1197
    %1202 = vrot.lane.b32.xlu0 %v1198, 64
    %v1203 = vpop.permute.xlu0 %1202
    %1204 = vrot.lane.b32.xlu0 %v1199, 64
    %v1205 = vpop.permute.xlu0 %1204
    %v1208 = vmul.f32 %v1165, %v1203
    %v1209 = vmul.f32 %v1167, %v1205
    %v1210 = vlaneseq
    %v1211 = vshrl.u32 %v1210, 7
    %v1212 = vsub.s32 0, %v1211
    %v1213 = vrot.slane %v63, %v1212
    %1215 = vrot.lane.b32.xlu0 %v1213, 96
    %v1216 = vpop.permute.xlu0 %1215
    %v1218 = vmul.f32 %v216, %v1216
    %v1219 = vmul.f32 %v217, %v1216
    %v1222 = vrot.slane %v1219, 7
    %v1223 = vsel %vm221, %v1222, %v1218
    %1224 = vrot.lane.b32.xlu0 %v1223, 32
    %v1225 = vpop.permute.xlu0 %1224
    %vm1227 = vcmask 254976
    %v1228 = vsel %vm1227, %v1225, 0.0
    %1229 = vadd.xlane.f32.xlu0 %v1228
    %v1230 = vpop.xlane.xlu0 %1229
    %v1231 = vlaneseq
    %v1232 = vshrl.u32 %v1231, 7
    %v1233 = vsub.s32 1, %v1232
    %v1234 = vrot.slane %v63, %v1233
    %1236 = vrot.lane.b32.xlu0 %v1234, 96
    %v1237 = vpop.permute.xlu0 %1236
    %v1239 = vmul.f32 %v357, %v1237
    %v1240 = vmul.f32 %v358, %v1237
    %v1243 = vrot.slane %v1240, 7
    %vm1244 = vcmask 1042434
    %v1245 = vsel %vm1244, %v1243, %v1239
    %1246 = vrot.lane.b32.xlu0 %v1245, 32
    %v1247 = vpop.permute.xlu0 %1246
    %vm1249 = vcmask 256001
    %v1250 = vsel %vm1249, %v1247, 0.0
    %1251 = vadd.xlane.f32.xlu0 %v1250
    %v1252 = vpop.xlane.xlu0 %1251
    %v1253 = vlaneseq
    %v1254 = vshrl.u32 %v1253, 7
    %v1255 = vsub.s32 2, %v1254
    %v1256 = vrot.slane %v63, %v1255
    %1258 = vrot.lane.b32.xlu0 %v1256, 96
    %v1259 = vpop.permute.xlu0 %1258
    %v1261 = vmul.f32 %v498, %v1259
    %v1262 = vmul.f32 %v499, %v1259
    %v1265 = vrot.slane %v1262, 7
    %vm1266 = vcmask 1043459
    %v1267 = vsel %vm1266, %v1265, %v1261
    %1268 = vrot.lane.b32.xlu0 %v1267, 32
    %v1269 = vpop.permute.xlu0 %1268
    %vm1271 = vcmask 257026
    %v1272 = vsel %vm1271, %v1269, 0.0
    %1273 = vadd.xlane.f32.xlu0 %v1272
    %v1274 = vpop.xlane.xlu0 %1273
    %v1275 = vlaneseq
    %v1276 = vshrl.u32 %v1275, 7
    %v1277 = vsub.s32 3, %v1276
    %v1278 = vrot.slane %v63, %v1277
    %1280 = vrot.lane.b32.xlu0 %v1278, 96
    %v1281 = vpop.permute.xlu0 %1280
    %v1283 = vmul.f32 %v640, %v1281
    %v1284 = vmul.f32 %v641, %v1281
    %v1287 = vrot.slane %v1284, 7
    %vm1288 = vcmask 1044484
    %v1289 = vsel %vm1288, %v1287, %v1283
    %1290 = vrot.lane.b32.xlu0 %v1289, 32
    %v1291 = vpop.permute.xlu0 %1290
    %vm1293 = vcmask 258051
    %v1294 = vsel %vm1293, %v1291, 0.0
    %1295 = vadd.xlane.f32.xlu0 %v1294
    %v1296 = vpop.xlane.xlu0 %1295
    %v1297 = vlaneseq
    %v1298 = vshrl.u32 %v1297, 7
    %v1299 = vsub.s32 4, %v1298
    %v1300 = vrot.slane %v63, %v1299
    %1302 = vrot.lane.b32.xlu0 %v1300, 96
    %v1303 = vpop.permute.xlu0 %1302
    %v1305 = vmul.f32 %v782, %v1303
    %v1306 = vmul.f32 %v783, %v1303
    %v1309 = vrot.slane %v1306, 7
    %vm1310 = vcmask 1045509
    %v1311 = vsel %vm1310, %v1309, %v1305
    %1312 = vrot.lane.b32.xlu0 %v1311, 32
    %v1313 = vpop.permute.xlu0 %1312
    %vm1315 = vcmask 259076
    %v1316 = vsel %vm1315, %v1313, 0.0
    %1317 = vadd.xlane.f32.xlu0 %v1316
    %v1318 = vpop.xlane.xlu0 %1317
    %v1319 = vlaneseq
    %v1320 = vshrl.u32 %v1319, 7
    %v1321 = vsub.s32 5, %v1320
    %v1322 = vrot.slane %v63, %v1321
    %1324 = vrot.lane.b32.xlu0 %v1322, 96
    %v1325 = vpop.permute.xlu0 %1324
    %v1327 = vmul.f32 %v924, %v1325
    %v1328 = vmul.f32 %v925, %v1325
    %v1331 = vrot.slane %v1328, 7
    %vm1332 = vcmask 1046534
    %v1333 = vsel %vm1332, %v1331, %v1327
    %1334 = vrot.lane.b32.xlu0 %v1333, 32
    %v1335 = vpop.permute.xlu0 %1334
    %vm1337 = vcmask 260101
    %v1338 = vsel %vm1337, %v1335, 0.0
    %1339 = vadd.xlane.f32.xlu0 %v1338
    %v1340 = vpop.xlane.xlu0 %1339
    %v1341 = vlaneseq
    %v1342 = vshrl.u32 %v1341, 7
    %v1343 = vsub.s32 6, %v1342
    %v1344 = vrot.slane %v63, %v1343
    %1346 = vrot.lane.b32.xlu0 %v1344, 96
    %v1347 = vpop.permute.xlu0 %1346
    %v1349 = vmul.f32 %v1066, %v1347
    %v1350 = vmul.f32 %v1067, %v1347
    %v1353 = vrot.slane %v1350, 7
    %vm1354 = vcmask 1047559
    %v1355 = vsel %vm1354, %v1353, %v1349
    %1356 = vrot.lane.b32.xlu0 %v1355, 32
    %v1357 = vpop.permute.xlu0 %1356
    %vm1359 = vcmask 261126
    %v1360 = vsel %vm1359, %v1357, 0.0
    %1361 = vadd.xlane.f32.xlu0 %v1360
    %v1362 = vpop.xlane.xlu0 %1361
    %v1363 = vlaneseq
    %v1364 = vshrl.u32 %v1363, 7
    %v1365 = vsub.s32 7, %v1364
    %v1366 = vrot.slane %v63, %v1365
    %1368 = vrot.lane.b32.xlu0 %v1366, 96
    %v1369 = vpop.permute.xlu0 %1368
    %v1371 = vmul.f32 %v1208, %v1369
    %v1372 = vmul.f32 %v1209, %v1369
    %v1375 = vrot.slane %v1372, 7
    %1376 = vrot.lane.b32.xlu0 %v1371, 32
    %v1377 = vpop.permute.xlu0 %1376
    %1378 = vrot.lane.b32.xlu0 %v1375, 32
    %v1379 = vpop.permute.xlu0 %1378
    %vm1382 = vcmask 261127
    %v1383 = vsel %vm1382, %v1377, 0.0
    %1384 = vadd.xlane.f32.xlu0 %v1383
    %v1385 = vpop.xlane.xlu0 %1384
    %vm1386 = vcmask 253952
    %v1387 = vsel %vm1386, %v1379, 0.0
    %1388 = vadd.xlane.f32.xlu0 %v1387
    %v1389 = vpop.xlane.xlu0 %1388
    %v1391 = vrot.slane %v1252, 1
    %v1393 = vmax.f32 %v1230, %v1391
    %v1395 = vrot.slane %v1274, 2
    %v1397 = vmax.f32 %v1393, %v1395
    %v1399 = vrot.slane %v1296, 3
    %v1401 = vmax.f32 %v1397, %v1399
    %v1403 = vrot.slane %v1318, 4
    %v1405 = vmax.f32 %v1401, %v1403
    %v1407 = vrot.slane %v1340, 5
    %v1409 = vmax.f32 %v1405, %v1407
    %v1411 = vrot.slane %v1362, 6
    %v1413 = vmax.f32 %v1409, %v1411
    %vm1416 = vcmask 1040384
    %v1417 = vrot.slane %v1385, 7
    %v1418 = vrot.slane %v1389, 7
    %v1419 = vsel %vm1416, %v1417, %v1418
    %v1421 = vmax.f32 %v1413, %v1419
    %v1422 = vsub.f32 %v1230, %v1421
    %v1423 = vmul.f32 %v1422, 1.442695
    %v1424 = vpow.pop %v1423
    %v1426 = vrot.slane %v1421, 7
    %v1428 = vsub.f32 %v1252, %v1426
    %v1429 = vmul.f32 %v1428, 1.442695
    %v1430 = vpow.pop %v1429
    %v1431 = vrot.slane %v1421, 6
    %v1433 = vsub.f32 %v1274, %v1431
    %v1434 = vmul.f32 %v1433, 1.442695
    %v1435 = vpow.pop %v1434
    %v1436 = vrot.slane %v1421, 5
    %v1438 = vsub.f32 %v1296, %v1436
    %v1439 = vmul.f32 %v1438, 1.442695
    %v1440 = vpow.pop %v1439
    %v1441 = vrot.slane %v1421, 4
    %v1443 = vsub.f32 %v1318, %v1441
    %v1444 = vmul.f32 %v1443, 1.442695
    %v1445 = vpow.pop %v1444
    %v1446 = vrot.slane %v1421, 3
    %v1448 = vsub.f32 %v1340, %v1446
    %v1449 = vmul.f32 %v1448, 1.442695
    %v1450 = vpow.pop %v1449
    %v1451 = vrot.slane %v1421, 2
    %v1453 = vsub.f32 %v1362, %v1451
    %v1454 = vmul.f32 %v1453, 1.442695
    %v1455 = vpow.pop %v1454
    %v1456 = vrot.slane %v1421, 1
    %v1458 = vsub.f32 %v1385, %v1456
    %v1459 = vsub.f32 %v1389, %v1456
    %v1460 = vmul.f32 %v1458, 1.442695
    %v1461 = vpow.pop %v1460
    %v1462 = vmul.f32 %v1459, 1.442695
    %v1463 = vpow.pop %v1462
    %v1465 = vrot.slane %v1430, 1
    %v1467 = vadd.f32 %v1424, %v1465
    %v1469 = vrot.slane %v1435, 2
    %v1471 = vadd.f32 %v1467, %v1469
    %v1473 = vrot.slane %v1440, 3
    %v1475 = vadd.f32 %v1471, %v1473
    %v1477 = vrot.slane %v1445, 4
    %v1479 = vadd.f32 %v1475, %v1477
    %v1481 = vrot.slane %v1450, 5
    %v1483 = vadd.f32 %v1479, %v1481
    %v1485 = vrot.slane %v1455, 6
    %v1487 = vadd.f32 %v1483, %v1485
    %v1490 = vrot.slane %v1461, 7
    %v1491 = vrot.slane %v1463, 7
    %v1492 = vsel %vm1416, %v1490, %v1491
    %v1494 = vadd.f32 %v1487, %v1492
    %1496 = vset.pattern.permute.xlu0 0
    %1497 = vperm.xlu0 %1496, %v1424
    %v1498 = vpop.permute.xlu0 %1497
    %v1501 = vmul.f32 %v1498, %v224
    %1502 = vset.pattern.permute.xlu0 0
    %1503 = vperm.xlu0 %1502, %v1430
    %v1504 = vpop.permute.xlu0 %1503
    %v1506 = vrot.slane %v358, 7
    %v1507 = vsel %vm1244, %v1506, %v357
    %1508 = vrot.lane.b32.xlu0 %v1507, 32
    %v1509 = vpop.permute.xlu0 %1508
    %v1511 = vmul.f32 %v1504, %v1509
    %v1513 = vrot.slane %v1511, 1
    %v1515 = vadd.f32 %v1501, %v1513
    %1516 = vset.pattern.permute.xlu0 0
    %1517 = vperm.xlu0 %1516, %v1435
    %v1518 = vpop.permute.xlu0 %1517
    %v1520 = vrot.slane %v499, 7
    %v1521 = vsel %vm1266, %v1520, %v498
    %1522 = vrot.lane.b32.xlu0 %v1521, 32
    %v1523 = vpop.permute.xlu0 %1522
    %v1525 = vmul.f32 %v1518, %v1523
    %v1527 = vrot.slane %v1525, 2
    %v1529 = vadd.f32 %v1515, %v1527
    %1530 = vset.pattern.permute.xlu0 0
    %1531 = vperm.xlu0 %1530, %v1440
    %v1532 = vpop.permute.xlu0 %1531
    %v1534 = vrot.slane %v641, 7
    %v1535 = vsel %vm1288, %v1534, %v640
    %1536 = vrot.lane.b32.xlu0 %v1535, 32
    %v1537 = vpop.permute.xlu0 %1536
    %v1539 = vmul.f32 %v1532, %v1537
    %v1541 = vrot.slane %v1539, 3
    %v1543 = vadd.f32 %v1529, %v1541
    %1544 = vset.pattern.permute.xlu0 0
    %1545 = vperm.xlu0 %1544, %v1445
    %v1546 = vpop.permute.xlu0 %1545
    %v1548 = vrot.slane %v783, 7
    %v1549 = vsel %vm1310, %v1548, %v782
    %1550 = vrot.lane.b32.xlu0 %v1549, 32
    %v1551 = vpop.permute.xlu0 %1550
    %v1553 = vmul.f32 %v1546, %v1551
    %v1555 = vrot.slane %v1553, 4
    %v1557 = vadd.f32 %v1543, %v1555
    %1558 = vset.pattern.permute.xlu0 0
    %1559 = vperm.xlu0 %1558, %v1450
    %v1560 = vpop.permute.xlu0 %1559
    %v1562 = vrot.slane %v925, 7
    %v1563 = vsel %vm1332, %v1562, %v924
    %1564 = vrot.lane.b32.xlu0 %v1563, 32
    %v1565 = vpop.permute.xlu0 %1564
    %v1567 = vmul.f32 %v1560, %v1565
    %v1569 = vrot.slane %v1567, 5
    %v1571 = vadd.f32 %v1557, %v1569
    %1572 = vset.pattern.permute.xlu0 0
    %1573 = vperm.xlu0 %1572, %v1455
    %v1574 = vpop.permute.xlu0 %1573
    %v1576 = vrot.slane %v1067, 7
    %v1577 = vsel %vm1354, %v1576, %v1066
    %1578 = vrot.lane.b32.xlu0 %v1577, 32
    %v1579 = vpop.permute.xlu0 %1578
    %v1581 = vmul.f32 %v1574, %v1579
    %v1583 = vrot.slane %v1581, 6
    %v1585 = vadd.f32 %v1571, %v1583
    %1586 = vset.pattern.permute.xlu0 0
    %1587 = vperm.xlu0 %1586, %v1461
    %v1588 = vpop.permute.xlu0 %1587
    %1590 = vset.pattern.permute.xlu0 0
    %1591 = vperm.xlu0 %1590, %v1463
    %v1592 = vpop.permute.xlu0 %1591
    %v1596 = vrot.slane %v1209, 7
    %1597 = vrot.lane.b32.xlu0 %v1208, 32
    %v1598 = vpop.permute.xlu0 %1597
    %1599 = vrot.lane.b32.xlu0 %v1596, 32
    %v1600 = vpop.permute.xlu0 %1599
    %v1603 = vmul.f32 %v1588, %v1598
    %v1604 = vmul.f32 %v1592, %v1600
    %v1607 = vrot.slane %v1603, 7
    %v1608 = vrot.slane %v1604, 7
    %v1609 = vsel %vm1416, %v1607, %v1608
    %v1611 = vadd.f32 %v1585, %v1609
    %1613 = vset.pattern.permute.xlu0 0
    %1614 = vperm.xlu0 %1613, %v1494
    %v1615 = vpop.permute.xlu0 %1614
    %v1617 = vrcp.pop %v1615
    %v1618 = vmul.f32 %v1611, %v1617
    %v1619 = vld [vmem:[#allocation5] sm:$0xff]
    %v1620 = vld [vmem:[#allocation5 + $0x8] sm:$0xff]
    %v1621 = vld [vmem:[#allocation5 + $0x10] sm:$0xff]
    %v1622 = vld [vmem:[#allocation5 + $0x18] sm:$0xff]
    %v1623 = vld [vmem:[%s6] sm:$0x1]
    %v1625 = vlaneseq
    %v1626 = vshrl.u32 %v1625, 7
    %v1627 = vsub.s32 0, %v1626
    %v1628 = vrot.slane %v1623, %v1627
    %v1631 = vsel %vm82, %v1618, 0
    %1633 = vmatprep.subr.mxu0 0.0
    %1634 = vmatpush1.msra.mxu0 0.0
    %1635 = vmatprep.subr.mxu0 0.0
    %1636 = vmatpush1.msra.mxu0 0.0
    %1637 = vmatprep.subr.mxu0 0.0
    %1638 = vmatpush1.msra.mxu0 0.0
    %1639 = vmatprep.subr.mxu0 0.0
    %1640 = vmatpush1.msra.mxu0 0.0
    %1641 = vmatprep.subr.mxu0 0.0
    %1642 = vmatpush1.msra.mxu0 0.0
    %1643 = vmatprep.subr.mxu0 0.0
    %1644 = vmatpush1.msra.mxu0 0.0
    %1645 = vmatprep.subr.mxu0 0.0
    %1646 = vmatpush1.msra.mxu0 0.0
    %1647 = vmatprep.subr.mxu0 0.0
    %1648 = vmatpush1.msra.mxu0 0.0
    %1649 = vmatprep.subr.mxu0 0.0
    %1650 = vmatpush1.msra.mxu0 0.0
    %1651 = vmatprep.subr.mxu0 0.0
    %1652 = vmatpush1.msra.mxu0 0.0
    %1653 = vmatprep.subr.mxu0 0.0
    %1654 = vmatpush1.msra.mxu0 0.0
    %1655 = vmatprep.subr.mxu0 0.0
    %1656 = vmatpush1.msra.mxu0 0.0
    %1657 = vmatprep.subr.mxu0 0.0
    %1658 = vmatpush1.msra.mxu0 %v1622
    %1659 = vmatprep.subr.mxu0 0.0
    %1660 = vmatpush1.msra.mxu0 %v1621
    %1661 = vmatprep.subr.mxu0 0.0
    %1662 = vmatpush1.msra.mxu0 %v1620
    %1663 = vmatprep.subr.mxu0 0.0
    %1664 = vmatpush1.msra.mxu0 %v1619
    %1665 = vmatprep.subr.mxu0 0.0
    %1666 = vmatpush2.msra.mxu0 0.0
    %1667 = vmatprep.subr.mxu0 0.0
    %1668 = vmatpush2.msra.mxu0 0.0
    %1669 = vmatprep.subr.mxu0 0.0
    %1670 = vmatpush2.msra.mxu0 0.0
    %1671 = vmatprep.subr.mxu0 0.0
    %1672 = vmatpush2.msra.mxu0 0.0
    %1673 = vmatprep.subr.mxu0 0.0
    %1674 = vmatpush2.msra.mxu0 0.0
    %1675 = vmatprep.subr.mxu0 0.0
    %1676 = vmatpush2.msra.mxu0 0.0
    %1677 = vmatprep.subr.mxu0 0.0
    %1678 = vmatpush2.msra.mxu0 0.0
    %1679 = vmatprep.subr.mxu0 0.0
    %1680 = vmatpush2.msra.mxu0 0.0
    %1681 = vmatprep.subr.mxu0 0.0
    %1682 = vmatpush2.msra.mxu0 0.0
    %1683 = vmatprep.subr.mxu0 0.0
    %1684 = vmatpush2.msra.mxu0 0.0
    %1685 = vmatprep.subr.mxu0 0.0
    %1686 = vmatpush2.msra.mxu0 0.0
    %1687 = vmatprep.subr.mxu0 0.0
    %1688 = vmatpush2.msra.mxu0 0.0
    %1689 = vmatprep.subr.mxu0 0.0
    %1690 = vmatpush2.msra.mxu0 0.0
    %1691 = vmatprep.subr.mxu0 0.0
    %1692 = vmatpush2.msra.mxu0 0.0
    %1693 = vmatprep.subr.mxu0 0.0
    %1694 = vmatpush2.msra.mxu0 0.0
    %1695 = vmatprep.subr.mxu0 0.0
    %1696 = vmatpush2.msra.mxu0 0.0
    %1697 = vmatprep.mubr.f32.mxu0 0.0
    %1698 = vmatmul.mubr.f32.gmra.mxu0 %v1631
    %v1699 = vpop.f32.mrf.mxu0
    %v1700 = vadd.f32 %v1628, %v1699
    %v1701 = vpop.f32.mrf.mxu0
    %1702 = vdwg.mxu0
    %v1703 = vmax.f32 %v1700, 0.0
    %1704 = vst.msk [vmem:[#allocation7] sm:$0x3] %vm1227, %v1703
    // Predicated region
    $region38: #{tpu_custom_call.1} parent=1 // pred_check
      _
    $region39: #{tpu_custom_call.1} parent=1 // pred_check_branch
      %1706 = sbr.rel (0) target = $region41
    $region40: #{tpu_custom_call.1} parent=1 // pred_region
      %s1708 = ssub.s32 32, 32
      %1709 = vsyncadd [#allocation4], %s1708
      %s1711 = sshll.u32 [#allocation7], 4
      %s1712 = int_to_ptr.vmem [resolvable:$true] %s1711
      %1714 = dma.vmem_to_hbm [thread:$0]  %s1712, 32, %s7, [#allocation4]
    $region41: #{tpu_custom_call.1} parent=1 // pred_fallthru
      _
    // Predicated region
    $region42: #{tpu_custom_call.1} parent=1 // pred_check
      _
    $region43: #{tpu_custom_call.1} parent=1 // pred_check_branch
      %1716 = sbr.rel (0) target = $region45
    $region44: #{tpu_custom_call.1} parent=1 // pred_region
      %1717 = dma.done [#allocation4], 32
    $region45: #{tpu_custom_call.1} parent=1 // pred_fallthru
      _
    %1718 = vsyncpa [#allocation3], 1
    %1719 = vsyncpa [#allocation6], 1
    %1720 = vsyncpa [#allocation4], 1

</llo_original>
